<compile_context>
chip_gen: v5e
topology: v5e:2x2
jax: 0.10.0
libtpu: 0.0.40
codegen_flags: <defaults>
</compile_context>

<pallas_src>
import copy

import numpy as np
import jax
import jax.numpy as jnp
from jax import lax
from jax.experimental import pallas as pl
from jax.experimental.pallas import tpu as pltpu


IN_FEATURES = 3 * 32 * 32      # 3072
HIDDEN = 64
OUT = 10

# contract the LAST dim of both operands ('NT' matmul: A @ B^T)
_NT = (((1,), (1,)), ((), ()))


# ----------------------------- fused Pallas kernel -----------------------------

def _fused_net_kernel(x_ref, w0t_ref, b0_ref, w1t_ref, w2t_ref, bc_ref, o_ref):
    """Entire NEAT graph in one shot; intermediates stay in vregs/VMEM:

         h   = x @ W0 + b0                      (W0 stored transposed, bf16)
         out = h @ W1 + relu(x) @ W2 + (b1+b2)  (W1, W2 stored transposed, bf16)
    """
    x = x_ref[...]                                           # (M, 3072) f32

    w0t = w0t_ref[...].astype(jnp.float32)                   # (64, 3072)
    h = lax.dot_general(x, w0t, _NT,
                        preferred_element_type=jnp.float32) + b0_ref[...]

    w1t = w1t_ref[...].astype(jnp.float32)                   # (10, 64)
    out = lax.dot_general(h, w1t, _NT, preferred_element_type=jnp.float32)

    w2t = w2t_ref[...].astype(jnp.float32)                   # (10, 3072)
    out = out + lax.dot_general(jnp.maximum(x, 0.0), w2t, _NT,
                                preferred_element_type=jnp.float32)

    o_ref[...] = (out + bc_ref[...]).astype(o_ref.dtype)


@jax.jit
def fused_net_forward(x0, w0t, b0, w1t, w2t, bc):
    """Single un-gridded pallas_call covering fc0, relu, fc1, fc2 and the adds.

    Every operand is one full VMEM-resident block (~0.5 MiB total with bf16,
    lane-dense weights), so each matmul is an uninterrupted K contraction with
    zero per-step grid overhead.  For throughput, callers should stack inputs
    so M is a multiple of 8 (ideally >= 128) — the weight DMA is then amortized
    over real MXU work instead of being repaid per tiny batch.
    """
    x = x0.reshape(-1, IN_FEATURES).astype(jnp.float32)
    m = x.shape[0]

    flops = 2 * m * (IN_FEATURES * HIDDEN + HIDDEN * OUT + IN_FEATURES * OUT)
    bytes_accessed = (
        m * IN_FEATURES * 4 + m * OUT * 4                               # x, out
        + 2 * (HIDDEN * IN_FEATURES + OUT * HIDDEN + OUT * IN_FEATURES)  # bf16 W
        + 4 * (HIDDEN + OUT)                                             # biases
    )

    vmem_spec = pl.BlockSpec(memory_space=pltpu.MemorySpace.VMEM)
    return pl.pallas_call(
        _fused_net_kernel,
        out_shape=jax.ShapeDtypeStruct((m, OUT), jnp.float32),
        in_specs=[vmem_spec] * 6,
        out_specs=vmem_spec,
        cost_estimate=pl.CostEstimate(flops=flops, transcendentals=0,
                                      bytes_accessed=bytes_accessed),
    )(x, w0t, b0, w1t, w2t, bc)


# ------------------------------ graph classes ------------------------------

class Connection:
    def __init__(self, s, e):
        self.s = s
        self.e = e
        self.enabled = True
        self.num = 0


class Node:
    def __init__(self, size=1, actF=jax.nn.relu):
        self.size = size
        self.actF = actF


class Net:
    """JAX/Pallas re-implementation of the PyTorch NEAT-style Net."""

    def __init__(self, nodes, connections, key):
        self.nodes = copy.deepcopy(nodes)
        self.connections = copy.deepcopy(connections)
        self.params = {}
        for i in range(len(connections)):
            conn = connections[i]
            key, sub = jax.random.split(key)
            self._add_linear(i, conn.s, conn.e, sub)
        self._build_fused_params()

    def _add_linear(self, num, s, e, key):
        # nn.Linear(in, out)-style init: U(-1/sqrt(in), 1/sqrt(in)); stored as
        # (in_features, out_features) "master" f32 weights.
        fan_in = self.nodes[s].size
        fan_out = self.nodes[e].size
        kw, kb = jax.random.split(key)
        bound = 1.0 / float(np.sqrt(fan_in))
        w = jax.random.uniform(kw, (fan_in, fan_out), jnp.float32, -bound, bound)
        b = jax.random.uniform(kb, (fan_out,), jnp.float32, -bound, bound)
        self.params[num] = (w, b)

    def _build_fused_params(self):
        # One-time (host-side) re-layout for the kernel:
        #   * weights transposed so the big K dim is the last (lane) dim,
        #   * weights cast to bf16 (halves HBM weight traffic),
        #   * the two output-node biases folded into one (1, 10) block.
        w0, b0 = self.params[0]
        w1, b1 = self.params[1]
        w2, b2 = self.params[2]
        self.fused = {
            "w0t": jnp.asarray(w0.T, jnp.bfloat16),          # (64, 3072)
            "b0":  b0.reshape(1, -1).astype(jnp.float32),    # (1, 64)
            "w1t": jnp.asarray(w1.T, jnp.bfloat16),          # (10, 64)
            "w2t": jnp.asarray(w2.T, jnp.bfloat16),          # (10, 3072)
            "bc":  (b1 + b2).reshape(1, -1).astype(jnp.float32),  # (1, 10)
        }

    def forward(self, x0):
        # The original torch forward() walks the connection graph with an
        # in-degree counter.  For the topology instantiated here
        # (0->2, 2->1, 0->1) that loop evaluates, in order, to exactly:
        #   h   = fc0(x_flat)                   # raw input, node 0 not yet activated
        #   out = fc1(h) + fc2(relu(x_flat))    # skip connection sees relu'd input
        # which is what the single fused kernel computes.
        # TODO(synk): an arbitrary/other NEAT topology would need the generic
        # (trace-time) graph-walk path; only this instantiated graph is fused.
        p = self.fused
        return fused_net_forward(x0, p["w0t"], p["b0"], p["w1t"], p["w2t"], p["bc"])

    # TODO(synk): train()/test() (optimizer, dataloaders) are host-side training
    # utilities with no Pallas equivalent and are intentionally not ported.


# ----------------------------------- main -----------------------------------

if __name__ == "__main__":
    key = jax.random.PRNGKey(0)
    k_in, k_net = jax.random.split(key)

    nodes = {0: Node(3 * 32 * 32), 1: Node(10), 2: Node(64)}
    connections = {0: Connection(0, 2), 1: Connection(2, 1), 2: Connection(0, 1)}
    net = Net(nodes, connections, k_net)

    x0 = jax.random.normal(k_in, (2, 3, 32, 32), jnp.float32)
    out = jax.block_until_ready(net.forward(x0))
    assert out.shape == (2, 10)

    # Pure-JAX reference of the exact original graph-walk semantics, using the
    # same bf16-rounded weight values the kernel consumes (upcast back to f32):
    #   h   = fc0(x0_flat)                  (raw input, no activation yet)
    #   out = fc1(h) + fc2(relu(x0_flat))   (skip sees relu'd input; h is NOT relu'd)
    x0f = x0.reshape(-1, IN_FEATURES)
    w0 = net.fused["w0t"].astype(jnp.float32).T      # (3072, 64)
    w1 = net.fused["w1t"].astype(jnp.float32).T      # (64, 10)
    w2 = net.fused["w2t"].astype(jnp.float32).T      # (3072, 10)
    b0 = net.fused["b0"][0]
    bc = net.fused["bc"][0]
    h = x0f @ w0 + b0
    ref = (h @ w1) + (jnp.maximum(x0f, 0.0) @ w2) + bc
    np.testing.assert_allclose(np.asarray(out), np.asarray(ref),
                               rtol=1e-5, atol=2e-5)
    print("KERNEL_OK")
</pallas_src>

<mosaic_0001>
module attributes {stable_mosaic.version = 11 : i64} {
  func.func @_fused_net_kernel(%arg0: memref<2x3072xf32, #tpu.memory_space<vmem>>, %arg1: memref<64x3072xbf16, #tpu.memory_space<vmem>>, %arg2: memref<1x64xf32, #tpu.memory_space<vmem>>, %arg3: memref<10x64xbf16, #tpu.memory_space<vmem>>, %arg4: memref<10x3072xbf16, #tpu.memory_space<vmem>>, %arg5: memref<1x10xf32, #tpu.memory_space<vmem>>, %arg6: memref<2x10xf32, #tpu.memory_space<vmem>>) attributes {dimension_semantics = [], scalar_prefetch = 0 : i64, scratch_operands = 0 : i64, tpu.core_type = #tpu.core_type<tc>} {
    %c0 = arith.constant 0 : index
    %c0_0 = arith.constant 0 : index
    %0 = vector.load %arg0[%c0, %c0_0] : memref<2x3072xf32, #tpu.memory_space<vmem>>, vector<2x3072xf32>
    %c0_1 = arith.constant 0 : index
    %c0_2 = arith.constant 0 : index
    %1 = vector.load %arg1[%c0_1, %c0_2] : memref<64x3072xbf16, #tpu.memory_space<vmem>>, vector<64x3072xbf16>
    %2 = arith.extf %1 : vector<64x3072xbf16> to vector<64x3072xf32>
    %cst = arith.constant dense<0.000000e+00> : vector<2x64xf32>
    %3 = tpu.matmul %0, %2, %cst {dimension_numbers = #tpu.dot_dimension_numbers<[1], [1], [0], [0], [0, 0, 1, 0], [], []>} : vector<2x3072xf32>, vector<64x3072xf32>, vector<2x64xf32> -> vector<2x64xf32>
    %c0_3 = arith.constant 0 : index
    %c0_4 = arith.constant 0 : index
    %4 = vector.load %arg2[%c0_3, %c0_4] : memref<1x64xf32, #tpu.memory_space<vmem>>, vector<1x64xf32>
    %5 = vector.broadcast %4 : vector<1x64xf32> to vector<2x64xf32>
    %6 = arith.addf %3, %5 : vector<2x64xf32>
    %c0_5 = arith.constant 0 : index
    %c0_6 = arith.constant 0 : index
    %7 = vector.load %arg3[%c0_5, %c0_6] : memref<10x64xbf16, #tpu.memory_space<vmem>>, vector<10x64xbf16>
    %8 = arith.extf %7 : vector<10x64xbf16> to vector<10x64xf32>
    %cst_7 = arith.constant dense<0.000000e+00> : vector<2x10xf32>
    %9 = tpu.matmul %6, %8, %cst_7 {dimension_numbers = #tpu.dot_dimension_numbers<[1], [1], [0], [0], [0, 0, 1, 0], [], []>} : vector<2x64xf32>, vector<10x64xf32>, vector<2x10xf32> -> vector<2x10xf32>
    %c0_8 = arith.constant 0 : index
    %c0_9 = arith.constant 0 : index
    %10 = vector.load %arg4[%c0_8, %c0_9] : memref<10x3072xbf16, #tpu.memory_space<vmem>>, vector<10x3072xbf16>
    %11 = arith.extf %10 : vector<10x3072xbf16> to vector<10x3072xf32>
    %cst_10 = arith.constant 0.000000e+00 : f32
    %12 = vector.broadcast %cst_10 : f32 to vector<2x3072xf32>
    %13 = arith.maximumf %0, %12 : vector<2x3072xf32>
    %cst_11 = arith.constant dense<0.000000e+00> : vector<2x10xf32>
    %14 = tpu.matmul %13, %11, %cst_11 {dimension_numbers = #tpu.dot_dimension_numbers<[1], [1], [0], [0], [0, 0, 1, 0], [], []>} : vector<2x3072xf32>, vector<10x3072xf32>, vector<2x10xf32> -> vector<2x10xf32>
    %15 = arith.addf %9, %14 : vector<2x10xf32>
    %c0_12 = arith.constant 0 : index
    %c0_13 = arith.constant 0 : index
    %16 = vector.load %arg5[%c0_12, %c0_13] : memref<1x10xf32, #tpu.memory_space<vmem>>, vector<1x10xf32>
    %17 = vector.broadcast %16 : vector<1x10xf32> to vector<2x10xf32>
    %18 = arith.addf %15, %17 : vector<2x10xf32>
    %c0_14 = arith.constant 0 : index
    %c0_15 = arith.constant 0 : index
    %19 = vector.load %arg6[%c0_14, %c0_15] : memref<2x10xf32, #tpu.memory_space<vmem>>, vector<2x10xf32>
    tpu.vector_store %arg6[%c0_14, %c0_15], %18 {strides = array<i32>} : memref<2x10xf32, #tpu.memory_space<vmem>>, vector<2x10xf32>,
    return
  }
}

</mosaic_0001>

<llo_original>
// kernel: fused_net_forward.1
$region0: #{fused_net_forward.1}
  #allocation0 [shape = 'u32[]', space=smem, size = 0x4, offset = 0x4, fixed_abs, tag = 'smem constant byte address 0x4 - core index']
  #allocation1 [shape = 'u32[72,128]{1,0:T(1,128)}', space=vmem, size = 0x9000, scoped, tag = 'internal scratch']
  %s0 = inlined_call_operand.vmem [shape: f32[2,3072], index: 0, kind: input, shape index: {}]
  %s1 = inlined_call_operand.hbm [shape: bf16[64,3072], index: 1, kind: input, shape index: {}]
  %s2 = inlined_call_operand.vmem [shape: f32[1,64], index: 2, kind: input, shape index: {}]
  %s3 = inlined_call_operand.vmem [shape: bf16[10,64], index: 3, kind: input, shape index: {}]
  %s4 = inlined_call_operand.vmem [shape: bf16[10,3072], index: 4, kind: input, shape index: {}]
  %s5 = inlined_call_operand.vmem [shape: f32[1,10], index: 5, kind: input, shape index: {}]
  %s6 = inlined_call_operand.hbm [shape: f32[2,10], index: 6, kind: output, shape index: {}]
  %s7 = sld [smem:[#allocation0]]
  $region38: #{fused_net_forward.1} parent=0
    _
  %s9 = ssub.s32 1, %s7
  %s10 = scalar_select 0, %s9, %s7
  $region1: #{fused_net_forward.1} parent=0
    #allocation2 [shape = 'u8[393216]{0}', space=vmem, size = 0x60000, scoped, tag = 'input window, operand 1, single buffered']
    #allocation3 [shape = 's32[1]{0}', space=sflag, size = 0x4, scoped, tag = 'scoped memory for fused_net_forward.1']
    #allocation4 [shape = 's32[1]{0}', space=sflag, size = 0x4, scoped, tag = 'scoped memory for fused_net_forward.1']
    #allocation5 [shape = 'u8[1024]{0}', space=vmem, size = 0x400, scoped, tag = 'output window, operand 0, single buffered']
    %11 = vsyncpa [#allocation3], 0
    %12 = vsyncpa [#allocation4], 0
    // Predicated region
    $region2: #{fused_net_forward.1} parent=1 // pred_check
      _
    $region3: #{fused_net_forward.1} parent=1 // pred_check_branch
      %14 = sbr.rel (0) target = $region5
    $region4: #{fused_net_forward.1} parent=1 // pred_region
      _
    $region5: #{fused_net_forward.1} parent=1 // pred_fallthru
      _
    // Predicated region
    $region6: #{fused_net_forward.1} parent=1 // pred_check
      _
    $region7: #{fused_net_forward.1} parent=1 // pred_check_branch
      %16 = sbr.rel (0) target = $region9
    $region8: #{fused_net_forward.1} parent=1 // pred_region
      %18 = vsyncadd [#allocation3], 0
      %s19 = sshll.u32 %s1, 4
      %s20 = int_to_ptr.hbm [resolvable:$true] %s19
      %s21 = sshll.u32 [#allocation2], 4
      %s22 = int_to_ptr.vmem [resolvable:$true] %s21
      %27 = dma.hbm_to_vmem [thread:$0]  %s20, 12288, %s22, [#allocation3], 1536, 1536, 96
    $region9: #{fused_net_forward.1} parent=1 // pred_fallthru
      _
    // Predicated region
    $region10: #{fused_net_forward.1} parent=1 // pred_check
      _
    $region11: #{fused_net_forward.1} parent=1 // pred_check_branch
      %29 = sbr.rel (0) target = $region13
    $region12: #{fused_net_forward.1} parent=1 // pred_region
      _
    $region13: #{fused_net_forward.1} parent=1 // pred_fallthru
      _
    // Predicated region
    $region14: #{fused_net_forward.1} parent=1 // pred_check
      _
    $region15: #{fused_net_forward.1} parent=1 // pred_check_branch
      %31 = sbr.rel (0) target = $region17
    $region16: #{fused_net_forward.1} parent=1 // pred_region
      _
    $region17: #{fused_net_forward.1} parent=1 // pred_fallthru
      _
    // Predicated region
    $region18: #{fused_net_forward.1} parent=1 // pred_check
      _
    $region19: #{fused_net_forward.1} parent=1 // pred_check_branch
      %33 = sbr.rel (0) target = $region21
    $region20: #{fused_net_forward.1} parent=1 // pred_region
      _
    $region21: #{fused_net_forward.1} parent=1 // pred_fallthru
      _
    // Predicated region
    $region22: #{fused_net_forward.1} parent=1 // pred_check
      _
    $region23: #{fused_net_forward.1} parent=1 // pred_check_branch
      %35 = sbr.rel (0) target = $region25
    $region24: #{fused_net_forward.1} parent=1 // pred_region
      _
    $region25: #{fused_net_forward.1} parent=1 // pred_fallthru
      _
    // Predicated region
    $region26: #{fused_net_forward.1} parent=1 // pred_check
      _
    $region27: #{fused_net_forward.1} parent=1 // pred_check_branch
      %37 = sbr.rel (0) target = $region29
    $region28: #{fused_net_forward.1} parent=1 // pred_region
      %39 = dma.done [#allocation3], 12288
    $region29: #{fused_net_forward.1} parent=1 // pred_fallthru
      _
    %v40 = vld [vmem:[%s0] sm:$0xff]
    %v41 = vld [vmem:[%s0 + $0x8] sm:$0xff]
    %v42 = vld [vmem:[%s0 + $0x10] sm:$0xff]
    %v43 = vld [vmem:[%s0 + $0x18] sm:$0xff]
    %v44 = vld [vmem:[%s0 + $0x20] sm:$0xff]
    %v45 = vld [vmem:[%s0 + $0x28] sm:$0xff]
    %v46 = vld [vmem:[#allocation2] sm:$0xff]
    %v47 = vld [vmem:[#allocation2 + $0x8] sm:$0xff]
    %v48 = vld [vmem:[#allocation2 + $0x10] sm:$0xff]
    %v49 = vld [vmem:[#allocation2 + $0x18] sm:$0xff]
    %v50 = vld [vmem:[#allocation2 + $0x20] sm:$0xff]
    %v51 = vld [vmem:[#allocation2 + $0x28] sm:$0xff]
    %v52 = vld [vmem:[#allocation2 + $0x30] sm:$0xff]
    %v53 = vld [vmem:[#allocation2 + $0x38] sm:$0xff]
    %v54 = vld [vmem:[#allocation2 + $0x40] sm:$0xff]
    %v55 = vld [vmem:[#allocation2 + $0x48] sm:$0xff]
    %v56 = vld [vmem:[#allocation2 + $0x50] sm:$0xff]
    %v57 = vld [vmem:[#allocation2 + $0x58] sm:$0xff]
    %v58 = vld [vmem:[#allocation2 + $0x60] sm:$0xff]
    %v59 = vld [vmem:[#allocation2 + $0x68] sm:$0xff]
    %v60 = vld [vmem:[#allocation2 + $0x70] sm:$0xff]
    %v61 = vld [vmem:[#allocation2 + $0x78] sm:$0xff]
    %v62 = vld [vmem:[#allocation2 + $0x80] sm:$0xff]
    %v63 = vld [vmem:[#allocation2 + $0x88] sm:$0xff]
    %v64 = vld [vmem:[#allocation2 + $0x90] sm:$0xff]
    %v65 = vld [vmem:[#allocation2 + $0x98] sm:$0xff]
    %v66 = vld [vmem:[#allocation2 + $0xa0] sm:$0xff]
    %v67 = vld [vmem:[#allocation2 + $0xa8] sm:$0xff]
    %v68 = vld [vmem:[#allocation2 + $0xb0] sm:$0xff]
    %v69 = vld [vmem:[#allocation2 + $0xb8] sm:$0xff]
    %v70 = vld [vmem:[#allocation2 + $0xc0] sm:$0xff]
    %v71 = vld [vmem:[#allocation2 + $0xc8] sm:$0xff]
    %v72 = vld [vmem:[#allocation2 + $0xd0] sm:$0xff]
    %v73 = vld [vmem:[#allocation2 + $0xd8] sm:$0xff]
    %v74 = vld [vmem:[#allocation2 + $0xe0] sm:$0xff]
    %v75 = vld [vmem:[#allocation2 + $0xe8] sm:$0xff]
    %v76 = vld [vmem:[#allocation2 + $0xf0] sm:$0xff]
    %v77 = vld [vmem:[#allocation2 + $0xf8] sm:$0xff]
    %v78 = vld [vmem:[#allocation2 + $0x100] sm:$0xff]
    %v79 = vld [vmem:[#allocation2 + $0x108] sm:$0xff]
    %v80 = vld [vmem:[#allocation2 + $0x110] sm:$0xff]
    %v81 = vld [vmem:[#allocation2 + $0x118] sm:$0xff]
    %v82 = vld [vmem:[#allocation2 + $0x120] sm:$0xff]
    %v83 = vld [vmem:[#allocation2 + $0x128] sm:$0xff]
    %v84 = vld [vmem:[#allocation2 + $0x130] sm:$0xff]
    %v85 = vld [vmem:[#allocation2 + $0x138] sm:$0xff]
    %v86 = vld [vmem:[#allocation2 + $0x140] sm:$0xff]
    %v87 = vld [vmem:[#allocation2 + $0x148] sm:$0xff]
    %v88 = vld [vmem:[#allocation2 + $0x150] sm:$0xff]
    %v89 = vld [vmem:[#allocation2 + $0x158] sm:$0xff]
    %v90 = vld [vmem:[#allocation2 + $0x160] sm:$0xff]
    %v91 = vld [vmem:[#allocation2 + $0x168] sm:$0xff]
    %v92 = vld [vmem:[#allocation2 + $0x170] sm:$0xff]
    %v93 = vld [vmem:[#allocation2 + $0x178] sm:$0xff]
    %v94 = vld [vmem:[#allocation2 + $0x180] sm:$0xff]
    %v95 = vld [vmem:[#allocation2 + $0x188] sm:$0xff]
    %v96 = vld [vmem:[#allocation2 + $0x190] sm:$0xff]
    %v97 = vld [vmem:[#allocation2 + $0x198] sm:$0xff]
    %v98 = vld [vmem:[#allocation2 + $0x1a0] sm:$0xff]
    %v99 = vld [vmem:[#allocation2 + $0x1a8] sm:$0xff]
    %v100 = vld [vmem:[#allocation2 + $0x1b0] sm:$0xff]
    %v101 = vld [vmem:[#allocation2 + $0x1b8] sm:$0xff]
    %v102 = vld [vmem:[#allocation2 + $0x1c0] sm:$0xff]
    %v103 = vld [vmem:[#allocation2 + $0x1c8] sm:$0xff]
    %v104 = vld [vmem:[#allocation2 + $0x1d0] sm:$0xff]
    %v105 = vld [vmem:[#allocation2 + $0x1d8] sm:$0xff]
    %v106 = vld [vmem:[#allocation2 + $0x1e0] sm:$0xff]
    %v107 = vld [vmem:[#allocation2 + $0x1e8] sm:$0xff]
    %v108 = vld [vmem:[#allocation2 + $0x1f0] sm:$0xff]
    %v109 = vld [vmem:[#allocation2 + $0x1f8] sm:$0xff]
    %v110 = vld [vmem:[#allocation2 + $0x200] sm:$0xff]
    %v111 = vld [vmem:[#allocation2 + $0x208] sm:$0xff]
    %v112 = vld [vmem:[#allocation2 + $0x210] sm:$0xff]
    %v113 = vld [vmem:[#allocation2 + $0x218] sm:$0xff]
    %v114 = vld [vmem:[#allocation2 + $0x220] sm:$0xff]
    %v115 = vld [vmem:[#allocation2 + $0x228] sm:$0xff]
    %v116 = vld [vmem:[#allocation2 + $0x230] sm:$0xff]
    %v117 = vld [vmem:[#allocation2 + $0x238] sm:$0xff]
    %v118 = vld [vmem:[#allocation2 + $0x240] sm:$0xff]
    %v119 = vld [vmem:[#allocation2 + $0x248] sm:$0xff]
    %v120 = vld [vmem:[#allocation2 + $0x250] sm:$0xff]
    %v121 = vld [vmem:[#allocation2 + $0x258] sm:$0xff]
    %v122 = vld [vmem:[#allocation2 + $0x260] sm:$0xff]
    %v123 = vld [vmem:[#allocation2 + $0x268] sm:$0xff]
    %v124 = vld [vmem:[#allocation2 + $0x270] sm:$0xff]
    %v125 = vld [vmem:[#allocation2 + $0x278] sm:$0xff]
    %v126 = vld [vmem:[#allocation2 + $0x280] sm:$0xff]
    %v127 = vld [vmem:[#allocation2 + $0x288] sm:$0xff]
    %v128 = vld [vmem:[#allocation2 + $0x290] sm:$0xff]
    %v129 = vld [vmem:[#allocation2 + $0x298] sm:$0xff]
    %v130 = vld [vmem:[#allocation2 + $0x2a0] sm:$0xff]
    %v131 = vld [vmem:[#allocation2 + $0x2a8] sm:$0xff]
    %v132 = vld [vmem:[#allocation2 + $0x2b0] sm:$0xff]
    %v133 = vld [vmem:[#allocation2 + $0x2b8] sm:$0xff]
    %v134 = vld [vmem:[#allocation2 + $0x2c0] sm:$0xff]
    %v135 = vld [vmem:[#allocation2 + $0x2c8] sm:$0xff]
    %v136 = vld [vmem:[#allocation2 + $0x2d0] sm:$0xff]
    %v137 = vld [vmem:[#allocation2 + $0x2d8] sm:$0xff]
    %v138 = vld [vmem:[#allocation2 + $0x2e0] sm:$0xff]
    %v139 = vld [vmem:[#allocation2 + $0x2e8] sm:$0xff]
    %v140 = vld [vmem:[#allocation2 + $0x2f0] sm:$0xff]
    %v141 = vld [vmem:[#allocation2 + $0x2f8] sm:$0xff]
    %v142 = vunpack.c.l.bf16 %v46
    %v143 = vunpack.c.h.bf16 %v46
    %v144 = vunpack.c.l.bf16 %v47
    %v145 = vunpack.c.h.bf16 %v47
    %v146 = vunpack.c.l.bf16 %v48
    %v147 = vunpack.c.h.bf16 %v48
    %v148 = vunpack.c.l.bf16 %v49
    %v149 = vunpack.c.h.bf16 %v49
    %v150 = vunpack.c.l.bf16 %v50
    %v151 = vunpack.c.h.bf16 %v50
    %v152 = vunpack.c.l.bf16 %v51
    %v153 = vunpack.c.h.bf16 %v51
    %v154 = vunpack.c.l.bf16 %v52
    %v155 = vunpack.c.h.bf16 %v52
    %v156 = vunpack.c.l.bf16 %v53
    %v157 = vunpack.c.h.bf16 %v53
    %v158 = vunpack.c.l.bf16 %v54
    %v159 = vunpack.c.h.bf16 %v54
    %v160 = vunpack.c.l.bf16 %v55
    %v161 = vunpack.c.h.bf16 %v55
    %v162 = vunpack.c.l.bf16 %v56
    %v163 = vunpack.c.h.bf16 %v56
    %v164 = vunpack.c.l.bf16 %v57
    %v165 = vunpack.c.h.bf16 %v57
    %v166 = vunpack.c.l.bf16 %v58
    %v167 = vunpack.c.h.bf16 %v58
    %v168 = vunpack.c.l.bf16 %v59
    %v169 = vunpack.c.h.bf16 %v59
    %v170 = vunpack.c.l.bf16 %v60
    %v171 = vunpack.c.h.bf16 %v60
    %v172 = vunpack.c.l.bf16 %v61
    %v173 = vunpack.c.h.bf16 %v61
    %v174 = vunpack.c.l.bf16 %v62
    %v175 = vunpack.c.h.bf16 %v62
    %v176 = vunpack.c.l.bf16 %v63
    %v177 = vunpack.c.h.bf16 %v63
    %v178 = vunpack.c.l.bf16 %v64
    %v179 = vunpack.c.h.bf16 %v64
    %v180 = vunpack.c.l.bf16 %v65
    %v181 = vunpack.c.h.bf16 %v65
    %v182 = vunpack.c.l.bf16 %v66
    %v183 = vunpack.c.h.bf16 %v66
    %v184 = vunpack.c.l.bf16 %v67
    %v185 = vunpack.c.h.bf16 %v67
    %v186 = vunpack.c.l.bf16 %v68
    %v187 = vunpack.c.h.bf16 %v68
    %v188 = vunpack.c.l.bf16 %v69
    %v189 = vunpack.c.h.bf16 %v69
    %v190 = vunpack.c.l.bf16 %v70
    %v191 = vunpack.c.h.bf16 %v70
    %v192 = vunpack.c.l.bf16 %v71
    %v193 = vunpack.c.h.bf16 %v71
    %v194 = vunpack.c.l.bf16 %v72
    %v195 = vunpack.c.h.bf16 %v72
    %v196 = vunpack.c.l.bf16 %v73
    %v197 = vunpack.c.h.bf16 %v73
    %v198 = vunpack.c.l.bf16 %v74
    %v199 = vunpack.c.h.bf16 %v74
    %v200 = vunpack.c.l.bf16 %v75
    %v201 = vunpack.c.h.bf16 %v75
    %v202 = vunpack.c.l.bf16 %v76
    %v203 = vunpack.c.h.bf16 %v76
    %v204 = vunpack.c.l.bf16 %v77
    %v205 = vunpack.c.h.bf16 %v77
    %v206 = vunpack.c.l.bf16 %v78
    %v207 = vunpack.c.h.bf16 %v78
    %v208 = vunpack.c.l.bf16 %v79
    %v209 = vunpack.c.h.bf16 %v79
    %v210 = vunpack.c.l.bf16 %v80
    %v211 = vunpack.c.h.bf16 %v80
    %v212 = vunpack.c.l.bf16 %v81
    %v213 = vunpack.c.h.bf16 %v81
    %v214 = vunpack.c.l.bf16 %v82
    %v215 = vunpack.c.h.bf16 %v82
    %v216 = vunpack.c.l.bf16 %v83
    %v217 = vunpack.c.h.bf16 %v83
    %v218 = vunpack.c.l.bf16 %v84
    %v219 = vunpack.c.h.bf16 %v84
    %v220 = vunpack.c.l.bf16 %v85
    %v221 = vunpack.c.h.bf16 %v85
    %v222 = vunpack.c.l.bf16 %v86
    %v223 = vunpack.c.h.bf16 %v86
    %v224 = vunpack.c.l.bf16 %v87
    %v225 = vunpack.c.h.bf16 %v87
    %v226 = vunpack.c.l.bf16 %v88
    %v227 = vunpack.c.h.bf16 %v88
    %v228 = vunpack.c.l.bf16 %v89
    %v229 = vunpack.c.h.bf16 %v89
    %v230 = vunpack.c.l.bf16 %v90
    %v231 = vunpack.c.h.bf16 %v90
    %v232 = vunpack.c.l.bf16 %v91
    %v233 = vunpack.c.h.bf16 %v91
    %v234 = vunpack.c.l.bf16 %v92
    %v235 = vunpack.c.h.bf16 %v92
    %v236 = vunpack.c.l.bf16 %v93
    %v237 = vunpack.c.h.bf16 %v93
    %v238 = vunpack.c.l.bf16 %v94
    %v239 = vunpack.c.h.bf16 %v94
    %v240 = vunpack.c.l.bf16 %v95
    %v241 = vunpack.c.h.bf16 %v95
    %v242 = vunpack.c.l.bf16 %v96
    %v243 = vunpack.c.h.bf16 %v96
    %v244 = vunpack.c.l.bf16 %v97
    %v245 = vunpack.c.h.bf16 %v97
    %v246 = vunpack.c.l.bf16 %v98
    %v247 = vunpack.c.h.bf16 %v98
    %v248 = vunpack.c.l.bf16 %v99
    %v249 = vunpack.c.h.bf16 %v99
    %v250 = vunpack.c.l.bf16 %v100
    %v251 = vunpack.c.h.bf16 %v100
    %v252 = vunpack.c.l.bf16 %v101
    %v253 = vunpack.c.h.bf16 %v101
    %v254 = vunpack.c.l.bf16 %v102
    %v255 = vunpack.c.h.bf16 %v102
    %v256 = vunpack.c.l.bf16 %v103
    %v257 = vunpack.c.h.bf16 %v103
    %v258 = vunpack.c.l.bf16 %v104
    %v259 = vunpack.c.h.bf16 %v104
    %v260 = vunpack.c.l.bf16 %v105
    %v261 = vunpack.c.h.bf16 %v105
    %v262 = vunpack.c.l.bf16 %v106
    %v263 = vunpack.c.h.bf16 %v106
    %v264 = vunpack.c.l.bf16 %v107
    %v265 = vunpack.c.h.bf16 %v107
    %v266 = vunpack.c.l.bf16 %v108
    %v267 = vunpack.c.h.bf16 %v108
    %v268 = vunpack.c.l.bf16 %v109
    %v269 = vunpack.c.h.bf16 %v109
    %v270 = vunpack.c.l.bf16 %v110
    %v271 = vunpack.c.h.bf16 %v110
    %v272 = vunpack.c.l.bf16 %v111
    %v273 = vunpack.c.h.bf16 %v111
    %v274 = vunpack.c.l.bf16 %v112
    %v275 = vunpack.c.h.bf16 %v112
    %v276 = vunpack.c.l.bf16 %v113
    %v277 = vunpack.c.h.bf16 %v113
    %v278 = vunpack.c.l.bf16 %v114
    %v279 = vunpack.c.h.bf16 %v114
    %v280 = vunpack.c.l.bf16 %v115
    %v281 = vunpack.c.h.bf16 %v115
    %v282 = vunpack.c.l.bf16 %v116
    %v283 = vunpack.c.h.bf16 %v116
    %v284 = vunpack.c.l.bf16 %v117
    %v285 = vunpack.c.h.bf16 %v117
    %v286 = vunpack.c.l.bf16 %v118
    %v287 = vunpack.c.h.bf16 %v118
    %v288 = vunpack.c.l.bf16 %v119
    %v289 = vunpack.c.h.bf16 %v119
    %v290 = vunpack.c.l.bf16 %v120
    %v291 = vunpack.c.h.bf16 %v120
    %v292 = vunpack.c.l.bf16 %v121
    %v293 = vunpack.c.h.bf16 %v121
    %v294 = vunpack.c.l.bf16 %v122
    %v295 = vunpack.c.h.bf16 %v122
    %v296 = vunpack.c.l.bf16 %v123
    %v297 = vunpack.c.h.bf16 %v123
    %v298 = vunpack.c.l.bf16 %v124
    %v299 = vunpack.c.h.bf16 %v124
    %v300 = vunpack.c.l.bf16 %v125
    %v301 = vunpack.c.h.bf16 %v125
    %v302 = vunpack.c.l.bf16 %v126
    %v303 = vunpack.c.h.bf16 %v126
    %v304 = vunpack.c.l.bf16 %v127
    %v305 = vunpack.c.h.bf16 %v127
    %v306 = vunpack.c.l.bf16 %v128
    %v307 = vunpack.c.h.bf16 %v128
    %v308 = vunpack.c.l.bf16 %v129
    %v309 = vunpack.c.h.bf16 %v129
    %v310 = vunpack.c.l.bf16 %v130
    %v311 = vunpack.c.h.bf16 %v130
    %v312 = vunpack.c.l.bf16 %v131
    %v313 = vunpack.c.h.bf16 %v131
    %v314 = vunpack.c.l.bf16 %v132
    %v315 = vunpack.c.h.bf16 %v132
    %v316 = vunpack.c.l.bf16 %v133
    %v317 = vunpack.c.h.bf16 %v133
    %v318 = vunpack.c.l.bf16 %v134
    %v319 = vunpack.c.h.bf16 %v134
    %v320 = vunpack.c.l.bf16 %v135
    %v321 = vunpack.c.h.bf16 %v135
    %v322 = vunpack.c.l.bf16 %v136
    %v323 = vunpack.c.h.bf16 %v136
    %v324 = vunpack.c.l.bf16 %v137
    %v325 = vunpack.c.h.bf16 %v137
    %v326 = vunpack.c.l.bf16 %v138
    %v327 = vunpack.c.h.bf16 %v138
    %v328 = vunpack.c.l.bf16 %v139
    %v329 = vunpack.c.h.bf16 %v139
    %v330 = vunpack.c.l.bf16 %v140
    %v331 = vunpack.c.h.bf16 %v140
    %v332 = vunpack.c.l.bf16 %v141
    %v333 = vunpack.c.h.bf16 %v141
    %v334 = vld [vmem:[%s2] sm:$0x1]
    %v336 = vperm.slane %v334, 0
    %344 = vst [vmem:[#allocation1] ss:$4 sm:$0xff] %v40
    %s345 = scalar_lea.vmem [#allocation1], 32
    %346 = vst [vmem:[%s345] ss:$4 sm:$0xff] %v41
    %v347 = vld.sshfl [vmem:[#allocation1] sm:$0xff pattern:$0x73625140]
    %v348 = vld.sshfl [vmem:[#allocation1 + $0x8] sm:$0xff pattern:$0x73625140]
    %v349 = vld.sshfl [vmem:[#allocation1 + $0x10] sm:$0xff pattern:$0x73625140]
    %v350 = vld.sshfl [vmem:[#allocation1 + $0x18] sm:$0xff pattern:$0x73625140]
    %v351 = vld.sshfl [vmem:[#allocation1 + $0x20] sm:$0xff pattern:$0x73625140]
    %v352 = vld.sshfl [vmem:[#allocation1 + $0x28] sm:$0xff pattern:$0x73625140]
    %v353 = vld.sshfl [vmem:[#allocation1 + $0x30] sm:$0xff pattern:$0x73625140]
    %v354 = vld.sshfl [vmem:[#allocation1 + $0x38] sm:$0xff pattern:$0x73625140]
    %355 = vst [vmem:[#allocation1] ss:$4 sm:$0xff] %v42
    %356 = vst [vmem:[%s345] ss:$4 sm:$0xff] %v43
    %v357 = vld.sshfl [vmem:[#allocation1] sm:$0xff pattern:$0x73625140]
    %v358 = vld.sshfl [vmem:[#allocation1 + $0x8] sm:$0xff pattern:$0x73625140]
    %v359 = vld.sshfl [vmem:[#allocation1 + $0x10] sm:$0xff pattern:$0x73625140]
    %v360 = vld.sshfl [vmem:[#allocation1 + $0x18] sm:$0xff pattern:$0x73625140]
    %v361 = vld.sshfl [vmem:[#allocation1 + $0x20] sm:$0xff pattern:$0x73625140]
    %v362 = vld.sshfl [vmem:[#allocation1 + $0x28] sm:$0xff pattern:$0x73625140]
    %v363 = vld.sshfl [vmem:[#allocation1 + $0x30] sm:$0xff pattern:$0x73625140]
    %v364 = vld.sshfl [vmem:[#allocation1 + $0x38] sm:$0xff pattern:$0x73625140]
    %365 = vst [vmem:[#allocation1] ss:$4 sm:$0xff] %v44
    %366 = vst [vmem:[%s345] ss:$4 sm:$0xff] %v45
    %v367 = vld.sshfl [vmem:[#allocation1] sm:$0xff pattern:$0x73625140]
    %v368 = vld.sshfl [vmem:[#allocation1 + $0x8] sm:$0xff pattern:$0x73625140]
    %v369 = vld.sshfl [vmem:[#allocation1 + $0x10] sm:$0xff pattern:$0x73625140]
    %v370 = vld.sshfl [vmem:[#allocation1 + $0x18] sm:$0xff pattern:$0x73625140]
    %v371 = vld.sshfl [vmem:[#allocation1 + $0x20] sm:$0xff pattern:$0x73625140]
    %v372 = vld.sshfl [vmem:[#allocation1 + $0x28] sm:$0xff pattern:$0x73625140]
    %v373 = vld.sshfl [vmem:[#allocation1 + $0x30] sm:$0xff pattern:$0x73625140]
    %v374 = vld.sshfl [vmem:[#allocation1 + $0x38] sm:$0xff pattern:$0x73625140]
    %399 = vmatpush.xpose.msra.mxu0 0.0
    %400 = vmatpush.xpose.msra.mxu0 0.0
    %401 = vmatpush.xpose.msra.mxu0 0.0
    %402 = vmatpush.xpose.msra.mxu0 0.0
    %403 = vmatpush.xpose.msra.mxu0 0.0
    %404 = vmatpush.xpose.msra.mxu0 0.0
    %405 = vmatpush.xpose.msra.mxu0 0.0
    %406 = vmatpush.xpose.msra.mxu0 0.0
    %407 = vmatpush.xpose.msra.mxu0 %v310
    %408 = vmatpush.xpose.msra.mxu0 %v286
    %409 = vmatpush.xpose.msra.mxu0 %v262
    %410 = vmatpush.xpose.msra.mxu0 %v238
    %411 = vmatpush.xpose.msra.mxu0 %v214
    %412 = vmatpush.xpose.msra.mxu0 %v190
    %413 = vmatpush.xpose.msra.mxu0 %v166
    %414 = vmatpush.xpose.msra.mxu0 %v142
    %415 = vmatmul.f32.gmra.mxu0 %v347
    %v416 = vpop.f32.mrf.mxu0
    %v417 = vadd.f32 %v336, %v416
    %418 = vdwg.mxu0
    %419 = vmatpush.xpose.msra.mxu0 0.0
    %420 = vmatpush.xpose.msra.mxu0 0.0
    %421 = vmatpush.xpose.msra.mxu0 0.0
    %422 = vmatpush.xpose.msra.mxu0 0.0
    %423 = vmatpush.xpose.msra.mxu0 0.0
    %424 = vmatpush.xpose.msra.mxu0 0.0
    %425 = vmatpush.xpose.msra.mxu0 0.0
    %426 = vmatpush.xpose.msra.mxu0 0.0
    %427 = vmatpush.xpose.msra.mxu0 %v311
    %428 = vmatpush.xpose.msra.mxu0 %v287
    %429 = vmatpush.xpose.msra.mxu0 %v263
    %430 = vmatpush.xpose.msra.mxu0 %v239
    %431 = vmatpush.xpose.msra.mxu0 %v215
    %432 = vmatpush.xpose.msra.mxu0 %v191
    %433 = vmatpush.xpose.msra.mxu0 %v167
    %434 = vmatpush.xpose.msra.mxu0 %v143
    %435 = vmatmul.f32.gmra.mxu0 %v348
    %v436 = vpop.f32.mrf.mxu0
    %v437 = vadd.f32 %v417, %v436
    %438 = vdwg.mxu0
    %439 = vmatpush.xpose.msra.mxu0 0.0
    %440 = vmatpush.xpose.msra.mxu0 0.0
    %441 = vmatpush.xpose.msra.mxu0 0.0
    %442 = vmatpush.xpose.msra.mxu0 0.0
    %443 = vmatpush.xpose.msra.mxu0 0.0
    %444 = vmatpush.xpose.msra.mxu0 0.0
    %445 = vmatpush.xpose.msra.mxu0 0.0
    %446 = vmatpush.xpose.msra.mxu0 0.0
    %447 = vmatpush.xpose.msra.mxu0 %v312
    %448 = vmatpush.xpose.msra.mxu0 %v288
    %449 = vmatpush.xpose.msra.mxu0 %v264
    %450 = vmatpush.xpose.msra.mxu0 %v240
    %451 = vmatpush.xpose.msra.mxu0 %v216
    %452 = vmatpush.xpose.msra.mxu0 %v192
    %453 = vmatpush.xpose.msra.mxu0 %v168
    %454 = vmatpush.xpose.msra.mxu0 %v144
    %455 = vmatmul.f32.gmra.mxu0 %v349
    %v456 = vpop.f32.mrf.mxu0
    %v457 = vadd.f32 %v437, %v456
    %458 = vdwg.mxu0
    %459 = vmatpush.xpose.msra.mxu0 0.0
    %460 = vmatpush.xpose.msra.mxu0 0.0
    %461 = vmatpush.xpose.msra.mxu0 0.0
    %462 = vmatpush.xpose.msra.mxu0 0.0
    %463 = vmatpush.xpose.msra.mxu0 0.0
    %464 = vmatpush.xpose.msra.mxu0 0.0
    %465 = vmatpush.xpose.msra.mxu0 0.0
    %466 = vmatpush.xpose.msra.mxu0 0.0
    %467 = vmatpush.xpose.msra.mxu0 %v313
    %468 = vmatpush.xpose.msra.mxu0 %v289
    %469 = vmatpush.xpose.msra.mxu0 %v265
    %470 = vmatpush.xpose.msra.mxu0 %v241
    %471 = vmatpush.xpose.msra.mxu0 %v217
    %472 = vmatpush.xpose.msra.mxu0 %v193
    %473 = vmatpush.xpose.msra.mxu0 %v169
    %474 = vmatpush.xpose.msra.mxu0 %v145
    %475 = vmatmul.f32.gmra.mxu0 %v350
    %v476 = vpop.f32.mrf.mxu0
    %v477 = vadd.f32 %v457, %v476
    %478 = vdwg.mxu0
    %479 = vmatpush.xpose.msra.mxu0 0.0
    %480 = vmatpush.xpose.msra.mxu0 0.0
    %481 = vmatpush.xpose.msra.mxu0 0.0
    %482 = vmatpush.xpose.msra.mxu0 0.0
    %483 = vmatpush.xpose.msra.mxu0 0.0
    %484 = vmatpush.xpose.msra.mxu0 0.0
    %485 = vmatpush.xpose.msra.mxu0 0.0
    %486 = vmatpush.xpose.msra.mxu0 0.0
    %487 = vmatpush.xpose.msra.mxu0 %v314
    %488 = vmatpush.xpose.msra.mxu0 %v290
    %489 = vmatpush.xpose.msra.mxu0 %v266
    %490 = vmatpush.xpose.msra.mxu0 %v242
    %491 = vmatpush.xpose.msra.mxu0 %v218
    %492 = vmatpush.xpose.msra.mxu0 %v194
    %493 = vmatpush.xpose.msra.mxu0 %v170
    %494 = vmatpush.xpose.msra.mxu0 %v146
    %495 = vmatmul.f32.gmra.mxu0 %v351
    %v496 = vpop.f32.mrf.mxu0
    %v497 = vadd.f32 %v477, %v496
    %498 = vdwg.mxu0
    %499 = vmatpush.xpose.msra.mxu0 0.0
    %500 = vmatpush.xpose.msra.mxu0 0.0
    %501 = vmatpush.xpose.msra.mxu0 0.0
    %502 = vmatpush.xpose.msra.mxu0 0.0
    %503 = vmatpush.xpose.msra.mxu0 0.0
    %504 = vmatpush.xpose.msra.mxu0 0.0
    %505 = vmatpush.xpose.msra.mxu0 0.0
    %506 = vmatpush.xpose.msra.mxu0 0.0
    %507 = vmatpush.xpose.msra.mxu0 %v315
    %508 = vmatpush.xpose.msra.mxu0 %v291
    %509 = vmatpush.xpose.msra.mxu0 %v267
    %510 = vmatpush.xpose.msra.mxu0 %v243
    %511 = vmatpush.xpose.msra.mxu0 %v219
    %512 = vmatpush.xpose.msra.mxu0 %v195
    %513 = vmatpush.xpose.msra.mxu0 %v171
    %514 = vmatpush.xpose.msra.mxu0 %v147
    %515 = vmatmul.f32.gmra.mxu0 %v352
    %v516 = vpop.f32.mrf.mxu0
    %v517 = vadd.f32 %v497, %v516
    %518 = vdwg.mxu0
    %519 = vmatpush.xpose.msra.mxu0 0.0
    %520 = vmatpush.xpose.msra.mxu0 0.0
    %521 = vmatpush.xpose.msra.mxu0 0.0
    %522 = vmatpush.xpose.msra.mxu0 0.0
    %523 = vmatpush.xpose.msra.mxu0 0.0
    %524 = vmatpush.xpose.msra.mxu0 0.0
    %525 = vmatpush.xpose.msra.mxu0 0.0
    %526 = vmatpush.xpose.msra.mxu0 0.0
    %527 = vmatpush.xpose.msra.mxu0 %v316
    %528 = vmatpush.xpose.msra.mxu0 %v292
    %529 = vmatpush.xpose.msra.mxu0 %v268
    %530 = vmatpush.xpose.msra.mxu0 %v244
    %531 = vmatpush.xpose.msra.mxu0 %v220
    %532 = vmatpush.xpose.msra.mxu0 %v196
    %533 = vmatpush.xpose.msra.mxu0 %v172
    %534 = vmatpush.xpose.msra.mxu0 %v148
    %535 = vmatmul.f32.gmra.mxu0 %v353
    %v536 = vpop.f32.mrf.mxu0
    %v537 = vadd.f32 %v517, %v536
    %538 = vdwg.mxu0
    %539 = vmatpush.xpose.msra.mxu0 0.0
    %540 = vmatpush.xpose.msra.mxu0 0.0
    %541 = vmatpush.xpose.msra.mxu0 0.0
    %542 = vmatpush.xpose.msra.mxu0 0.0
    %543 = vmatpush.xpose.msra.mxu0 0.0
    %544 = vmatpush.xpose.msra.mxu0 0.0
    %545 = vmatpush.xpose.msra.mxu0 0.0
    %546 = vmatpush.xpose.msra.mxu0 0.0
    %547 = vmatpush.xpose.msra.mxu0 %v317
    %548 = vmatpush.xpose.msra.mxu0 %v293
    %549 = vmatpush.xpose.msra.mxu0 %v269
    %550 = vmatpush.xpose.msra.mxu0 %v245
    %551 = vmatpush.xpose.msra.mxu0 %v221
    %552 = vmatpush.xpose.msra.mxu0 %v197
    %553 = vmatpush.xpose.msra.mxu0 %v173
    %554 = vmatpush.xpose.msra.mxu0 %v149
    %555 = vmatmul.f32.gmra.mxu0 %v354
    %v556 = vpop.f32.mrf.mxu0
    %v557 = vadd.f32 %v537, %v556
    %558 = vdwg.mxu0
    %559 = vmatpush.xpose.msra.mxu0 0.0
    %560 = vmatpush.xpose.msra.mxu0 0.0
    %561 = vmatpush.xpose.msra.mxu0 0.0
    %562 = vmatpush.xpose.msra.mxu0 0.0
    %563 = vmatpush.xpose.msra.mxu0 0.0
    %564 = vmatpush.xpose.msra.mxu0 0.0
    %565 = vmatpush.xpose.msra.mxu0 0.0
    %566 = vmatpush.xpose.msra.mxu0 0.0
    %567 = vmatpush.xpose.msra.mxu0 %v318
    %568 = vmatpush.xpose.msra.mxu0 %v294
    %569 = vmatpush.xpose.msra.mxu0 %v270
    %570 = vmatpush.xpose.msra.mxu0 %v246
    %571 = vmatpush.xpose.msra.mxu0 %v222
    %572 = vmatpush.xpose.msra.mxu0 %v198
    %573 = vmatpush.xpose.msra.mxu0 %v174
    %574 = vmatpush.xpose.msra.mxu0 %v150
    %575 = vmatmul.f32.gmra.mxu0 %v357
    %v576 = vpop.f32.mrf.mxu0
    %v577 = vadd.f32 %v557, %v576
    %578 = vdwg.mxu0
    %579 = vmatpush.xpose.msra.mxu0 0.0
    %580 = vmatpush.xpose.msra.mxu0 0.0
    %581 = vmatpush.xpose.msra.mxu0 0.0
    %582 = vmatpush.xpose.msra.mxu0 0.0
    %583 = vmatpush.xpose.msra.mxu0 0.0
    %584 = vmatpush.xpose.msra.mxu0 0.0
    %585 = vmatpush.xpose.msra.mxu0 0.0
    %586 = vmatpush.xpose.msra.mxu0 0.0
    %587 = vmatpush.xpose.msra.mxu0 %v319
    %588 = vmatpush.xpose.msra.mxu0 %v295
    %589 = vmatpush.xpose.msra.mxu0 %v271
    %590 = vmatpush.xpose.msra.mxu0 %v247
    %591 = vmatpush.xpose.msra.mxu0 %v223
    %592 = vmatpush.xpose.msra.mxu0 %v199
    %593 = vmatpush.xpose.msra.mxu0 %v175
    %594 = vmatpush.xpose.msra.mxu0 %v151
    %595 = vmatmul.f32.gmra.mxu0 %v358
    %v596 = vpop.f32.mrf.mxu0
    %v597 = vadd.f32 %v577, %v596
    %598 = vdwg.mxu0
    %599 = vmatpush.xpose.msra.mxu0 0.0
    %600 = vmatpush.xpose.msra.mxu0 0.0
    %601 = vmatpush.xpose.msra.mxu0 0.0
    %602 = vmatpush.xpose.msra.mxu0 0.0
    %603 = vmatpush.xpose.msra.mxu0 0.0
    %604 = vmatpush.xpose.msra.mxu0 0.0
    %605 = vmatpush.xpose.msra.mxu0 0.0
    %606 = vmatpush.xpose.msra.mxu0 0.0
    %607 = vmatpush.xpose.msra.mxu0 %v320
    %608 = vmatpush.xpose.msra.mxu0 %v296
    %609 = vmatpush.xpose.msra.mxu0 %v272
    %610 = vmatpush.xpose.msra.mxu0 %v248
    %611 = vmatpush.xpose.msra.mxu0 %v224
    %612 = vmatpush.xpose.msra.mxu0 %v200
    %613 = vmatpush.xpose.msra.mxu0 %v176
    %614 = vmatpush.xpose.msra.mxu0 %v152
    %615 = vmatmul.f32.gmra.mxu0 %v359
    %v616 = vpop.f32.mrf.mxu0
    %v617 = vadd.f32 %v597, %v616
    %618 = vdwg.mxu0
    %619 = vmatpush.xpose.msra.mxu0 0.0
    %620 = vmatpush.xpose.msra.mxu0 0.0
    %621 = vmatpush.xpose.msra.mxu0 0.0
    %622 = vmatpush.xpose.msra.mxu0 0.0
    %623 = vmatpush.xpose.msra.mxu0 0.0
    %624 = vmatpush.xpose.msra.mxu0 0.0
    %625 = vmatpush.xpose.msra.mxu0 0.0
    %626 = vmatpush.xpose.msra.mxu0 0.0
    %627 = vmatpush.xpose.msra.mxu0 %v321
    %628 = vmatpush.xpose.msra.mxu0 %v297
    %629 = vmatpush.xpose.msra.mxu0 %v273
    %630 = vmatpush.xpose.msra.mxu0 %v249
    %631 = vmatpush.xpose.msra.mxu0 %v225
    %632 = vmatpush.xpose.msra.mxu0 %v201
    %633 = vmatpush.xpose.msra.mxu0 %v177
    %634 = vmatpush.xpose.msra.mxu0 %v153
    %635 = vmatmul.f32.gmra.mxu0 %v360
    %v636 = vpop.f32.mrf.mxu0
    %v637 = vadd.f32 %v617, %v636
    %638 = vdwg.mxu0
    %639 = vmatpush.xpose.msra.mxu0 0.0
    %640 = vmatpush.xpose.msra.mxu0 0.0
    %641 = vmatpush.xpose.msra.mxu0 0.0
    %642 = vmatpush.xpose.msra.mxu0 0.0
    %643 = vmatpush.xpose.msra.mxu0 0.0
    %644 = vmatpush.xpose.msra.mxu0 0.0
    %645 = vmatpush.xpose.msra.mxu0 0.0
    %646 = vmatpush.xpose.msra.mxu0 0.0
    %647 = vmatpush.xpose.msra.mxu0 %v322
    %648 = vmatpush.xpose.msra.mxu0 %v298
    %649 = vmatpush.xpose.msra.mxu0 %v274
    %650 = vmatpush.xpose.msra.mxu0 %v250
    %651 = vmatpush.xpose.msra.mxu0 %v226
    %652 = vmatpush.xpose.msra.mxu0 %v202
    %653 = vmatpush.xpose.msra.mxu0 %v178
    %654 = vmatpush.xpose.msra.mxu0 %v154
    %655 = vmatmul.f32.gmra.mxu0 %v361
    %v656 = vpop.f32.mrf.mxu0
    %v657 = vadd.f32 %v637, %v656
    %658 = vdwg.mxu0
    %659 = vmatpush.xpose.msra.mxu0 0.0
    %660 = vmatpush.xpose.msra.mxu0 0.0
    %661 = vmatpush.xpose.msra.mxu0 0.0
    %662 = vmatpush.xpose.msra.mxu0 0.0
    %663 = vmatpush.xpose.msra.mxu0 0.0
    %664 = vmatpush.xpose.msra.mxu0 0.0
    %665 = vmatpush.xpose.msra.mxu0 0.0
    %666 = vmatpush.xpose.msra.mxu0 0.0
    %667 = vmatpush.xpose.msra.mxu0 %v323
    %668 = vmatpush.xpose.msra.mxu0 %v299
    %669 = vmatpush.xpose.msra.mxu0 %v275
    %670 = vmatpush.xpose.msra.mxu0 %v251
    %671 = vmatpush.xpose.msra.mxu0 %v227
    %672 = vmatpush.xpose.msra.mxu0 %v203
    %673 = vmatpush.xpose.msra.mxu0 %v179
    %674 = vmatpush.xpose.msra.mxu0 %v155
    %675 = vmatmul.f32.gmra.mxu0 %v362
    %v676 = vpop.f32.mrf.mxu0
    %v677 = vadd.f32 %v657, %v676
    %678 = vdwg.mxu0
    %679 = vmatpush.xpose.msra.mxu0 0.0
    %680 = vmatpush.xpose.msra.mxu0 0.0
    %681 = vmatpush.xpose.msra.mxu0 0.0
    %682 = vmatpush.xpose.msra.mxu0 0.0
    %683 = vmatpush.xpose.msra.mxu0 0.0
    %684 = vmatpush.xpose.msra.mxu0 0.0
    %685 = vmatpush.xpose.msra.mxu0 0.0
    %686 = vmatpush.xpose.msra.mxu0 0.0
    %687 = vmatpush.xpose.msra.mxu0 %v324
    %688 = vmatpush.xpose.msra.mxu0 %v300
    %689 = vmatpush.xpose.msra.mxu0 %v276
    %690 = vmatpush.xpose.msra.mxu0 %v252
    %691 = vmatpush.xpose.msra.mxu0 %v228
    %692 = vmatpush.xpose.msra.mxu0 %v204
    %693 = vmatpush.xpose.msra.mxu0 %v180
    %694 = vmatpush.xpose.msra.mxu0 %v156
    %695 = vmatmul.f32.gmra.mxu0 %v363
    %v696 = vpop.f32.mrf.mxu0
    %v697 = vadd.f32 %v677, %v696
    %698 = vdwg.mxu0
    %699 = vmatpush.xpose.msra.mxu0 0.0
    %700 = vmatpush.xpose.msra.mxu0 0.0
    %701 = vmatpush.xpose.msra.mxu0 0.0
    %702 = vmatpush.xpose.msra.mxu0 0.0
    %703 = vmatpush.xpose.msra.mxu0 0.0
    %704 = vmatpush.xpose.msra.mxu0 0.0
    %705 = vmatpush.xpose.msra.mxu0 0.0
    %706 = vmatpush.xpose.msra.mxu0 0.0
    %707 = vmatpush.xpose.msra.mxu0 %v325
    %708 = vmatpush.xpose.msra.mxu0 %v301
    %709 = vmatpush.xpose.msra.mxu0 %v277
    %710 = vmatpush.xpose.msra.mxu0 %v253
    %711 = vmatpush.xpose.msra.mxu0 %v229
    %712 = vmatpush.xpose.msra.mxu0 %v205
    %713 = vmatpush.xpose.msra.mxu0 %v181
    %714 = vmatpush.xpose.msra.mxu0 %v157
    %715 = vmatmul.f32.gmra.mxu0 %v364
    %v716 = vpop.f32.mrf.mxu0
    %v717 = vadd.f32 %v697, %v716
    %718 = vdwg.mxu0
    %719 = vmatpush.xpose.msra.mxu0 0.0
    %720 = vmatpush.xpose.msra.mxu0 0.0
    %721 = vmatpush.xpose.msra.mxu0 0.0
    %722 = vmatpush.xpose.msra.mxu0 0.0
    %723 = vmatpush.xpose.msra.mxu0 0.0
    %724 = vmatpush.xpose.msra.mxu0 0.0
    %725 = vmatpush.xpose.msra.mxu0 0.0
    %726 = vmatpush.xpose.msra.mxu0 0.0
    %727 = vmatpush.xpose.msra.mxu0 %v326
    %728 = vmatpush.xpose.msra.mxu0 %v302
    %729 = vmatpush.xpose.msra.mxu0 %v278
    %730 = vmatpush.xpose.msra.mxu0 %v254
    %731 = vmatpush.xpose.msra.mxu0 %v230
    %732 = vmatpush.xpose.msra.mxu0 %v206
    %733 = vmatpush.xpose.msra.mxu0 %v182
    %734 = vmatpush.xpose.msra.mxu0 %v158
    %735 = vmatmul.f32.gmra.mxu0 %v367
    %v736 = vpop.f32.mrf.mxu0
    %v737 = vadd.f32 %v717, %v736
    %738 = vdwg.mxu0
    %739 = vmatpush.xpose.msra.mxu0 0.0
    %740 = vmatpush.xpose.msra.mxu0 0.0
    %741 = vmatpush.xpose.msra.mxu0 0.0
    %742 = vmatpush.xpose.msra.mxu0 0.0
    %743 = vmatpush.xpose.msra.mxu0 0.0
    %744 = vmatpush.xpose.msra.mxu0 0.0
    %745 = vmatpush.xpose.msra.mxu0 0.0
    %746 = vmatpush.xpose.msra.mxu0 0.0
    %747 = vmatpush.xpose.msra.mxu0 %v327
    %748 = vmatpush.xpose.msra.mxu0 %v303
    %749 = vmatpush.xpose.msra.mxu0 %v279
    %750 = vmatpush.xpose.msra.mxu0 %v255
    %751 = vmatpush.xpose.msra.mxu0 %v231
    %752 = vmatpush.xpose.msra.mxu0 %v207
    %753 = vmatpush.xpose.msra.mxu0 %v183
    %754 = vmatpush.xpose.msra.mxu0 %v159
    %755 = vmatmul.f32.gmra.mxu0 %v368
    %v756 = vpop.f32.mrf.mxu0
    %v757 = vadd.f32 %v737, %v756
    %758 = vdwg.mxu0
    %759 = vmatpush.xpose.msra.mxu0 0.0
    %760 = vmatpush.xpose.msra.mxu0 0.0
    %761 = vmatpush.xpose.msra.mxu0 0.0
    %762 = vmatpush.xpose.msra.mxu0 0.0
    %763 = vmatpush.xpose.msra.mxu0 0.0
    %764 = vmatpush.xpose.msra.mxu0 0.0
    %765 = vmatpush.xpose.msra.mxu0 0.0
    %766 = vmatpush.xpose.msra.mxu0 0.0
    %767 = vmatpush.xpose.msra.mxu0 %v328
    %768 = vmatpush.xpose.msra.mxu0 %v304
    %769 = vmatpush.xpose.msra.mxu0 %v280
    %770 = vmatpush.xpose.msra.mxu0 %v256
    %771 = vmatpush.xpose.msra.mxu0 %v232
    %772 = vmatpush.xpose.msra.mxu0 %v208
    %773 = vmatpush.xpose.msra.mxu0 %v184
    %774 = vmatpush.xpose.msra.mxu0 %v160
    %775 = vmatmul.f32.gmra.mxu0 %v369
    %v776 = vpop.f32.mrf.mxu0
    %v777 = vadd.f32 %v757, %v776
    %778 = vdwg.mxu0
    %779 = vmatpush.xpose.msra.mxu0 0.0
    %780 = vmatpush.xpose.msra.mxu0 0.0
    %781 = vmatpush.xpose.msra.mxu0 0.0
    %782 = vmatpush.xpose.msra.mxu0 0.0
    %783 = vmatpush.xpose.msra.mxu0 0.0
    %784 = vmatpush.xpose.msra.mxu0 0.0
    %785 = vmatpush.xpose.msra.mxu0 0.0
    %786 = vmatpush.xpose.msra.mxu0 0.0
    %787 = vmatpush.xpose.msra.mxu0 %v329
    %788 = vmatpush.xpose.msra.mxu0 %v305
    %789 = vmatpush.xpose.msra.mxu0 %v281
    %790 = vmatpush.xpose.msra.mxu0 %v257
    %791 = vmatpush.xpose.msra.mxu0 %v233
    %792 = vmatpush.xpose.msra.mxu0 %v209
    %793 = vmatpush.xpose.msra.mxu0 %v185
    %794 = vmatpush.xpose.msra.mxu0 %v161
    %795 = vmatmul.f32.gmra.mxu0 %v370
    %v796 = vpop.f32.mrf.mxu0
    %v797 = vadd.f32 %v777, %v796
    %798 = vdwg.mxu0
    %799 = vmatpush.xpose.msra.mxu0 0.0
    %800 = vmatpush.xpose.msra.mxu0 0.0
    %801 = vmatpush.xpose.msra.mxu0 0.0
    %802 = vmatpush.xpose.msra.mxu0 0.0
    %803 = vmatpush.xpose.msra.mxu0 0.0
    %804 = vmatpush.xpose.msra.mxu0 0.0
    %805 = vmatpush.xpose.msra.mxu0 0.0
    %806 = vmatpush.xpose.msra.mxu0 0.0
    %807 = vmatpush.xpose.msra.mxu0 %v330
    %808 = vmatpush.xpose.msra.mxu0 %v306
    %809 = vmatpush.xpose.msra.mxu0 %v282
    %810 = vmatpush.xpose.msra.mxu0 %v258
    %811 = vmatpush.xpose.msra.mxu0 %v234
    %812 = vmatpush.xpose.msra.mxu0 %v210
    %813 = vmatpush.xpose.msra.mxu0 %v186
    %814 = vmatpush.xpose.msra.mxu0 %v162
    %815 = vmatmul.f32.gmra.mxu0 %v371
    %v816 = vpop.f32.mrf.mxu0
    %v817 = vadd.f32 %v797, %v816
    %818 = vdwg.mxu0
    %819 = vmatpush.xpose.msra.mxu0 0.0
    %820 = vmatpush.xpose.msra.mxu0 0.0
    %821 = vmatpush.xpose.msra.mxu0 0.0
    %822 = vmatpush.xpose.msra.mxu0 0.0
    %823 = vmatpush.xpose.msra.mxu0 0.0
    %824 = vmatpush.xpose.msra.mxu0 0.0
    %825 = vmatpush.xpose.msra.mxu0 0.0
    %826 = vmatpush.xpose.msra.mxu0 0.0
    %827 = vmatpush.xpose.msra.mxu0 %v331
    %828 = vmatpush.xpose.msra.mxu0 %v307
    %829 = vmatpush.xpose.msra.mxu0 %v283
    %830 = vmatpush.xpose.msra.mxu0 %v259
    %831 = vmatpush.xpose.msra.mxu0 %v235
    %832 = vmatpush.xpose.msra.mxu0 %v211
    %833 = vmatpush.xpose.msra.mxu0 %v187
    %834 = vmatpush.xpose.msra.mxu0 %v163
    %835 = vmatmul.f32.gmra.mxu0 %v372
    %v836 = vpop.f32.mrf.mxu0
    %v837 = vadd.f32 %v817, %v836
    %838 = vdwg.mxu0
    %839 = vmatpush.xpose.msra.mxu0 0.0
    %840 = vmatpush.xpose.msra.mxu0 0.0
    %841 = vmatpush.xpose.msra.mxu0 0.0
    %842 = vmatpush.xpose.msra.mxu0 0.0
    %843 = vmatpush.xpose.msra.mxu0 0.0
    %844 = vmatpush.xpose.msra.mxu0 0.0
    %845 = vmatpush.xpose.msra.mxu0 0.0
    %846 = vmatpush.xpose.msra.mxu0 0.0
    %847 = vmatpush.xpose.msra.mxu0 %v332
    %848 = vmatpush.xpose.msra.mxu0 %v308
    %849 = vmatpush.xpose.msra.mxu0 %v284
    %850 = vmatpush.xpose.msra.mxu0 %v260
    %851 = vmatpush.xpose.msra.mxu0 %v236
    %852 = vmatpush.xpose.msra.mxu0 %v212
    %853 = vmatpush.xpose.msra.mxu0 %v188
    %854 = vmatpush.xpose.msra.mxu0 %v164
    %855 = vmatmul.f32.gmra.mxu0 %v373
    %v856 = vpop.f32.mrf.mxu0
    %v857 = vadd.f32 %v837, %v856
    %858 = vdwg.mxu0
    %859 = vmatpush.xpose.msra.mxu0 0.0
    %860 = vmatpush.xpose.msra.mxu0 0.0
    %861 = vmatpush.xpose.msra.mxu0 0.0
    %862 = vmatpush.xpose.msra.mxu0 0.0
    %863 = vmatpush.xpose.msra.mxu0 0.0
    %864 = vmatpush.xpose.msra.mxu0 0.0
    %865 = vmatpush.xpose.msra.mxu0 0.0
    %866 = vmatpush.xpose.msra.mxu0 0.0
    %867 = vmatpush.xpose.msra.mxu0 %v333
    %868 = vmatpush.xpose.msra.mxu0 %v309
    %869 = vmatpush.xpose.msra.mxu0 %v285
    %870 = vmatpush.xpose.msra.mxu0 %v261
    %871 = vmatpush.xpose.msra.mxu0 %v237
    %872 = vmatpush.xpose.msra.mxu0 %v213
    %873 = vmatpush.xpose.msra.mxu0 %v189
    %874 = vmatpush.xpose.msra.mxu0 %v165
    %875 = vmatmul.f32.gmra.mxu0 %v374
    %v876 = vpop.f32.mrf.mxu0
    %v877 = vadd.f32 %v857, %v876
    %878 = vdwg.mxu0
    %v879 = vld [vmem:[%s3] sm:$0xf]
    %v880 = vld [vmem:[%s3 + $0x4] sm:$0x1]
    %v881 = vunpack.c.l.bf16 %v879
    %v882 = vunpack.c.l.bf16 %v880
    %v883 = vld [vmem:[%s4] sm:$0xff]
    %v884 = vld [vmem:[%s4 + $0x8] sm:$0xff]
    %v885 = vld [vmem:[%s4 + $0x10] sm:$0xff]
    %v886 = vld [vmem:[%s4 + $0x18] sm:$0xff]
    %v887 = vld [vmem:[%s4 + $0x20] sm:$0xff]
    %v888 = vld [vmem:[%s4 + $0x28] sm:$0xff]
    %v889 = vld [vmem:[%s4 + $0x30] sm:$0xff]
    %v890 = vld [vmem:[%s4 + $0x38] sm:$0xff]
    %v891 = vld [vmem:[%s4 + $0x40] sm:$0xff]
    %v892 = vld [vmem:[%s4 + $0x48] sm:$0xff]
    %v893 = vld [vmem:[%s4 + $0x50] sm:$0xff]
    %v894 = vld [vmem:[%s4 + $0x58] sm:$0xff]
    %v895 = vld [vmem:[%s4 + $0x60] sm:$0x11]
    %v896 = vld [vmem:[%s4 + $0x68] sm:$0x11]
    %v897 = vld [vmem:[%s4 + $0x70] sm:$0x11]
    %v898 = vld [vmem:[%s4 + $0x78] sm:$0x11]
    %v899 = vld [vmem:[%s4 + $0x80] sm:$0x11]
    %v900 = vld [vmem:[%s4 + $0x88] sm:$0x11]
    %v901 = vld [vmem:[%s4 + $0x90] sm:$0x11]
    %v902 = vld [vmem:[%s4 + $0x98] sm:$0x11]
    %v903 = vld [vmem:[%s4 + $0xa0] sm:$0x11]
    %v904 = vld [vmem:[%s4 + $0xa8] sm:$0x11]
    %v905 = vld [vmem:[%s4 + $0xb0] sm:$0x11]
    %v906 = vld [vmem:[%s4 + $0xb8] sm:$0x11]
    %v907 = vunpack.c.l.bf16 %v883
    %v908 = vunpack.c.h.bf16 %v883
    %v909 = vunpack.c.l.bf16 %v884
    %v910 = vunpack.c.h.bf16 %v884
    %v911 = vunpack.c.l.bf16 %v885
    %v912 = vunpack.c.h.bf16 %v885
    %v913 = vunpack.c.l.bf16 %v886
    %v914 = vunpack.c.h.bf16 %v886
    %v915 = vunpack.c.l.bf16 %v887
    %v916 = vunpack.c.h.bf16 %v887
    %v917 = vunpack.c.l.bf16 %v888
    %v918 = vunpack.c.h.bf16 %v888
    %v919 = vunpack.c.l.bf16 %v889
    %v920 = vunpack.c.h.bf16 %v889
    %v921 = vunpack.c.l.bf16 %v890
    %v922 = vunpack.c.h.bf16 %v890
    %v923 = vunpack.c.l.bf16 %v891
    %v924 = vunpack.c.h.bf16 %v891
    %v925 = vunpack.c.l.bf16 %v892
    %v926 = vunpack.c.h.bf16 %v892
    %v927 = vunpack.c.l.bf16 %v893
    %v928 = vunpack.c.h.bf16 %v893
    %v929 = vunpack.c.l.bf16 %v894
    %v930 = vunpack.c.h.bf16 %v894
    %v931 = vunpack.c.l.bf16 %v895
    %v932 = vunpack.c.h.bf16 %v895
    %v933 = vunpack.c.l.bf16 %v896
    %v934 = vunpack.c.h.bf16 %v896
    %v935 = vunpack.c.l.bf16 %v897
    %v936 = vunpack.c.h.bf16 %v897
    %v937 = vunpack.c.l.bf16 %v898
    %v938 = vunpack.c.h.bf16 %v898
    %v939 = vunpack.c.l.bf16 %v899
    %v940 = vunpack.c.h.bf16 %v899
    %v941 = vunpack.c.l.bf16 %v900
    %v942 = vunpack.c.h.bf16 %v900
    %v943 = vunpack.c.l.bf16 %v901
    %v944 = vunpack.c.h.bf16 %v901
    %v945 = vunpack.c.l.bf16 %v902
    %v946 = vunpack.c.h.bf16 %v902
    %v947 = vunpack.c.l.bf16 %v903
    %v948 = vunpack.c.h.bf16 %v903
    %v949 = vunpack.c.l.bf16 %v904
    %v950 = vunpack.c.h.bf16 %v904
    %v951 = vunpack.c.l.bf16 %v905
    %v952 = vunpack.c.h.bf16 %v905
    %v953 = vunpack.c.l.bf16 %v906
    %v954 = vunpack.c.h.bf16 %v906
    %v955 = vmax.f32 %v40, 0.0
    %v956 = vmax.f32 %v41, 0.0
    %v957 = vmax.f32 %v42, 0.0
    %v958 = vmax.f32 %v43, 0.0
    %v959 = vmax.f32 %v44, 0.0
    %v960 = vmax.f32 %v45, 0.0
    %967 = vst [vmem:[#allocation1] ss:$4 sm:$0xff] %v955
    %s968 = scalar_lea.vmem [#allocation1], 32
    %969 = vst [vmem:[%s968] ss:$4 sm:$0xff] %v956
    %v970 = vld.sshfl [vmem:[#allocation1] sm:$0xff pattern:$0x73625140]
    %v971 = vld.sshfl [vmem:[#allocation1 + $0x8] sm:$0xff pattern:$0x73625140]
    %v972 = vld.sshfl [vmem:[#allocation1 + $0x10] sm:$0xff pattern:$0x73625140]
    %v973 = vld.sshfl [vmem:[#allocation1 + $0x18] sm:$0xff pattern:$0x73625140]
    %v974 = vld.sshfl [vmem:[#allocation1 + $0x20] sm:$0xff pattern:$0x73625140]
    %v975 = vld.sshfl [vmem:[#allocation1 + $0x28] sm:$0xff pattern:$0x73625140]
    %v976 = vld.sshfl [vmem:[#allocation1 + $0x30] sm:$0xff pattern:$0x73625140]
    %v977 = vld.sshfl [vmem:[#allocation1 + $0x38] sm:$0xff pattern:$0x73625140]
    %978 = vst [vmem:[#allocation1] ss:$4 sm:$0xff] %v957
    %979 = vst [vmem:[%s968] ss:$4 sm:$0xff] %v958
    %v980 = vld.sshfl [vmem:[#allocation1] sm:$0xff pattern:$0x73625140]
    %v981 = vld.sshfl [vmem:[#allocation1 + $0x8] sm:$0xff pattern:$0x73625140]
    %v982 = vld.sshfl [vmem:[#allocation1 + $0x10] sm:$0xff pattern:$0x73625140]
    %v983 = vld.sshfl [vmem:[#allocation1 + $0x18] sm:$0xff pattern:$0x73625140]
    %v984 = vld.sshfl [vmem:[#allocation1 + $0x20] sm:$0xff pattern:$0x73625140]
    %v985 = vld.sshfl [vmem:[#allocation1 + $0x28] sm:$0xff pattern:$0x73625140]
    %v986 = vld.sshfl [vmem:[#allocation1 + $0x30] sm:$0xff pattern:$0x73625140]
    %v987 = vld.sshfl [vmem:[#allocation1 + $0x38] sm:$0xff pattern:$0x73625140]
    %988 = vst [vmem:[#allocation1] ss:$4 sm:$0xff] %v959
    %989 = vst [vmem:[%s968] ss:$4 sm:$0xff] %v960
    %v990 = vld.sshfl [vmem:[#allocation1] sm:$0xff pattern:$0x73625140]
    %v991 = vld.sshfl [vmem:[#allocation1 + $0x8] sm:$0xff pattern:$0x73625140]
    %v992 = vld.sshfl [vmem:[#allocation1 + $0x10] sm:$0xff pattern:$0x73625140]
    %v993 = vld.sshfl [vmem:[#allocation1 + $0x18] sm:$0xff pattern:$0x73625140]
    %v994 = vld.sshfl [vmem:[#allocation1 + $0x20] sm:$0xff pattern:$0x73625140]
    %v995 = vld.sshfl [vmem:[#allocation1 + $0x28] sm:$0xff pattern:$0x73625140]
    %v996 = vld.sshfl [vmem:[#allocation1 + $0x30] sm:$0xff pattern:$0x73625140]
    %v997 = vld.sshfl [vmem:[#allocation1 + $0x38] sm:$0xff pattern:$0x73625140]
    %1022 = vmatpush.xpose.msra.mxu0 0.0
    %1023 = vmatpush.xpose.msra.mxu0 0.0
    %1024 = vmatpush.xpose.msra.mxu0 0.0
    %1025 = vmatpush.xpose.msra.mxu0 0.0
    %1026 = vmatpush.xpose.msra.mxu0 0.0
    %1027 = vmatpush.xpose.msra.mxu0 0.0
    %1028 = vmatpush.xpose.msra.mxu0 0.0
    %1029 = vmatpush.xpose.msra.mxu0 0.0
    %1030 = vmatpush.xpose.msra.mxu0 0.0
    %1031 = vmatpush.xpose.msra.mxu0 0.0
    %1032 = vmatpush.xpose.msra.mxu0 0.0
    %1033 = vmatpush.xpose.msra.mxu0 0.0
    %1034 = vmatpush.xpose.msra.mxu0 0.0
    %1035 = vmatpush.xpose.msra.mxu0 0.0
    %1036 = vmatpush.xpose.msra.mxu0 %v931
    %1037 = vmatpush.xpose.msra.mxu0 %v907
    %1038 = vmatmul.f32.gmra.mxu0 %v970
    %v1039 = vpop.f32.mrf.mxu0
    %v1040 = vadd.f32 0.0, %v1039
    %1041 = vdwg.mxu0
    %1042 = vmatpush.xpose.msra.mxu0 0.0
    %1043 = vmatpush.xpose.msra.mxu0 0.0
    %1044 = vmatpush.xpose.msra.mxu0 0.0
    %1045 = vmatpush.xpose.msra.mxu0 0.0
    %1046 = vmatpush.xpose.msra.mxu0 0.0
    %1047 = vmatpush.xpose.msra.mxu0 0.0
    %1048 = vmatpush.xpose.msra.mxu0 0.0
    %1049 = vmatpush.xpose.msra.mxu0 0.0
    %1050 = vmatpush.xpose.msra.mxu0 0.0
    %1051 = vmatpush.xpose.msra.mxu0 0.0
    %1052 = vmatpush.xpose.msra.mxu0 0.0
    %1053 = vmatpush.xpose.msra.mxu0 0.0
    %1054 = vmatpush.xpose.msra.mxu0 0.0
    %1055 = vmatpush.xpose.msra.mxu0 0.0
    %1056 = vmatpush.xpose.msra.mxu0 %v932
    %1057 = vmatpush.xpose.msra.mxu0 %v908
    %1058 = vmatmul.f32.gmra.mxu0 %v971
    %v1059 = vpop.f32.mrf.mxu0
    %v1060 = vadd.f32 %v1040, %v1059
    %1061 = vdwg.mxu0
    %1062 = vmatpush.xpose.msra.mxu0 0.0
    %1063 = vmatpush.xpose.msra.mxu0 0.0
    %1064 = vmatpush.xpose.msra.mxu0 0.0
    %1065 = vmatpush.xpose.msra.mxu0 0.0
    %1066 = vmatpush.xpose.msra.mxu0 0.0
    %1067 = vmatpush.xpose.msra.mxu0 0.0
    %1068 = vmatpush.xpose.msra.mxu0 0.0
    %1069 = vmatpush.xpose.msra.mxu0 0.0
    %1070 = vmatpush.xpose.msra.mxu0 0.0
    %1071 = vmatpush.xpose.msra.mxu0 0.0
    %1072 = vmatpush.xpose.msra.mxu0 0.0
    %1073 = vmatpush.xpose.msra.mxu0 0.0
    %1074 = vmatpush.xpose.msra.mxu0 0.0
    %1075 = vmatpush.xpose.msra.mxu0 0.0
    %1076 = vmatpush.xpose.msra.mxu0 %v933
    %1077 = vmatpush.xpose.msra.mxu0 %v909
    %1078 = vmatmul.f32.gmra.mxu0 %v972
    %v1079 = vpop.f32.mrf.mxu0
    %v1080 = vadd.f32 %v1060, %v1079
    %1081 = vdwg.mxu0
    %1082 = vmatpush.xpose.msra.mxu0 0.0
    %1083 = vmatpush.xpose.msra.mxu0 0.0
    %1084 = vmatpush.xpose.msra.mxu0 0.0
    %1085 = vmatpush.xpose.msra.mxu0 0.0
    %1086 = vmatpush.xpose.msra.mxu0 0.0
    %1087 = vmatpush.xpose.msra.mxu0 0.0
    %1088 = vmatpush.xpose.msra.mxu0 0.0
    %1089 = vmatpush.xpose.msra.mxu0 0.0
    %1090 = vmatpush.xpose.msra.mxu0 0.0
    %1091 = vmatpush.xpose.msra.mxu0 0.0
    %1092 = vmatpush.xpose.msra.mxu0 0.0
    %1093 = vmatpush.xpose.msra.mxu0 0.0
    %1094 = vmatpush.xpose.msra.mxu0 0.0
    %1095 = vmatpush.xpose.msra.mxu0 0.0
    %1096 = vmatpush.xpose.msra.mxu0 %v934
    %1097 = vmatpush.xpose.msra.mxu0 %v910
    %1098 = vmatmul.f32.gmra.mxu0 %v973
    %v1099 = vpop.f32.mrf.mxu0
    %v1100 = vadd.f32 %v1080, %v1099
    %1101 = vdwg.mxu0
    %1102 = vmatpush.xpose.msra.mxu0 0.0
    %1103 = vmatpush.xpose.msra.mxu0 0.0
    %1104 = vmatpush.xpose.msra.mxu0 0.0
    %1105 = vmatpush.xpose.msra.mxu0 0.0
    %1106 = vmatpush.xpose.msra.mxu0 0.0
    %1107 = vmatpush.xpose.msra.mxu0 0.0
    %1108 = vmatpush.xpose.msra.mxu0 0.0
    %1109 = vmatpush.xpose.msra.mxu0 0.0
    %1110 = vmatpush.xpose.msra.mxu0 0.0
    %1111 = vmatpush.xpose.msra.mxu0 0.0
    %1112 = vmatpush.xpose.msra.mxu0 0.0
    %1113 = vmatpush.xpose.msra.mxu0 0.0
    %1114 = vmatpush.xpose.msra.mxu0 0.0
    %1115 = vmatpush.xpose.msra.mxu0 0.0
    %1116 = vmatpush.xpose.msra.mxu0 %v935
    %1117 = vmatpush.xpose.msra.mxu0 %v911
    %1118 = vmatmul.f32.gmra.mxu0 %v974
    %v1119 = vpop.f32.mrf.mxu0
    %v1120 = vadd.f32 %v1100, %v1119
    %1121 = vdwg.mxu0
    %1122 = vmatpush.xpose.msra.mxu0 0.0
    %1123 = vmatpush.xpose.msra.mxu0 0.0
    %1124 = vmatpush.xpose.msra.mxu0 0.0
    %1125 = vmatpush.xpose.msra.mxu0 0.0
    %1126 = vmatpush.xpose.msra.mxu0 0.0
    %1127 = vmatpush.xpose.msra.mxu0 0.0
    %1128 = vmatpush.xpose.msra.mxu0 0.0
    %1129 = vmatpush.xpose.msra.mxu0 0.0
    %1130 = vmatpush.xpose.msra.mxu0 0.0
    %1131 = vmatpush.xpose.msra.mxu0 0.0
    %1132 = vmatpush.xpose.msra.mxu0 0.0
    %1133 = vmatpush.xpose.msra.mxu0 0.0
    %1134 = vmatpush.xpose.msra.mxu0 0.0
    %1135 = vmatpush.xpose.msra.mxu0 0.0
    %1136 = vmatpush.xpose.msra.mxu0 %v936
    %1137 = vmatpush.xpose.msra.mxu0 %v912
    %1138 = vmatmul.f32.gmra.mxu0 %v975
    %v1139 = vpop.f32.mrf.mxu0
    %v1140 = vadd.f32 %v1120, %v1139
    %1141 = vdwg.mxu0
    %1142 = vmatpush.xpose.msra.mxu0 0.0
    %1143 = vmatpush.xpose.msra.mxu0 0.0
    %1144 = vmatpush.xpose.msra.mxu0 0.0
    %1145 = vmatpush.xpose.msra.mxu0 0.0
    %1146 = vmatpush.xpose.msra.mxu0 0.0
    %1147 = vmatpush.xpose.msra.mxu0 0.0
    %1148 = vmatpush.xpose.msra.mxu0 0.0
    %1149 = vmatpush.xpose.msra.mxu0 0.0
    %1150 = vmatpush.xpose.msra.mxu0 0.0
    %1151 = vmatpush.xpose.msra.mxu0 0.0
    %1152 = vmatpush.xpose.msra.mxu0 0.0
    %1153 = vmatpush.xpose.msra.mxu0 0.0
    %1154 = vmatpush.xpose.msra.mxu0 0.0
    %1155 = vmatpush.xpose.msra.mxu0 0.0
    %1156 = vmatpush.xpose.msra.mxu0 %v937
    %1157 = vmatpush.xpose.msra.mxu0 %v913
    %1158 = vmatmul.f32.gmra.mxu0 %v976
    %v1159 = vpop.f32.mrf.mxu0
    %v1160 = vadd.f32 %v1140, %v1159
    %1161 = vdwg.mxu0
    %1162 = vmatpush.xpose.msra.mxu0 0.0
    %1163 = vmatpush.xpose.msra.mxu0 0.0
    %1164 = vmatpush.xpose.msra.mxu0 0.0
    %1165 = vmatpush.xpose.msra.mxu0 0.0
    %1166 = vmatpush.xpose.msra.mxu0 0.0
    %1167 = vmatpush.xpose.msra.mxu0 0.0
    %1168 = vmatpush.xpose.msra.mxu0 0.0
    %1169 = vmatpush.xpose.msra.mxu0 0.0
    %1170 = vmatpush.xpose.msra.mxu0 0.0
    %1171 = vmatpush.xpose.msra.mxu0 0.0
    %1172 = vmatpush.xpose.msra.mxu0 0.0
    %1173 = vmatpush.xpose.msra.mxu0 0.0
    %1174 = vmatpush.xpose.msra.mxu0 0.0
    %1175 = vmatpush.xpose.msra.mxu0 0.0
    %1176 = vmatpush.xpose.msra.mxu0 %v938
    %1177 = vmatpush.xpose.msra.mxu0 %v914
    %1178 = vmatmul.f32.gmra.mxu0 %v977
    %v1179 = vpop.f32.mrf.mxu0
    %v1180 = vadd.f32 %v1160, %v1179
    %1181 = vdwg.mxu0
    %1182 = vmatpush.xpose.msra.mxu0 0.0
    %1183 = vmatpush.xpose.msra.mxu0 0.0
    %1184 = vmatpush.xpose.msra.mxu0 0.0
    %1185 = vmatpush.xpose.msra.mxu0 0.0
    %1186 = vmatpush.xpose.msra.mxu0 0.0
    %1187 = vmatpush.xpose.msra.mxu0 0.0
    %1188 = vmatpush.xpose.msra.mxu0 0.0
    %1189 = vmatpush.xpose.msra.mxu0 0.0
    %1190 = vmatpush.xpose.msra.mxu0 0.0
    %1191 = vmatpush.xpose.msra.mxu0 0.0
    %1192 = vmatpush.xpose.msra.mxu0 0.0
    %1193 = vmatpush.xpose.msra.mxu0 0.0
    %1194 = vmatpush.xpose.msra.mxu0 0.0
    %1195 = vmatpush.xpose.msra.mxu0 0.0
    %1196 = vmatpush.xpose.msra.mxu0 %v939
    %1197 = vmatpush.xpose.msra.mxu0 %v915
    %1198 = vmatmul.f32.gmra.mxu0 %v980
    %v1199 = vpop.f32.mrf.mxu0
    %v1200 = vadd.f32 %v1180, %v1199
    %1201 = vdwg.mxu0
    %1202 = vmatpush.xpose.msra.mxu0 0.0
    %1203 = vmatpush.xpose.msra.mxu0 0.0
    %1204 = vmatpush.xpose.msra.mxu0 0.0
    %1205 = vmatpush.xpose.msra.mxu0 0.0
    %1206 = vmatpush.xpose.msra.mxu0 0.0
    %1207 = vmatpush.xpose.msra.mxu0 0.0
    %1208 = vmatpush.xpose.msra.mxu0 0.0
    %1209 = vmatpush.xpose.msra.mxu0 0.0
    %1210 = vmatpush.xpose.msra.mxu0 0.0
    %1211 = vmatpush.xpose.msra.mxu0 0.0
    %1212 = vmatpush.xpose.msra.mxu0 0.0
    %1213 = vmatpush.xpose.msra.mxu0 0.0
    %1214 = vmatpush.xpose.msra.mxu0 0.0
    %1215 = vmatpush.xpose.msra.mxu0 0.0
    %1216 = vmatpush.xpose.msra.mxu0 %v940
    %1217 = vmatpush.xpose.msra.mxu0 %v916
    %1218 = vmatmul.f32.gmra.mxu0 %v981
    %v1219 = vpop.f32.mrf.mxu0
    %v1220 = vadd.f32 %v1200, %v1219
    %1221 = vdwg.mxu0
    %1222 = vmatpush.xpose.msra.mxu0 0.0
    %1223 = vmatpush.xpose.msra.mxu0 0.0
    %1224 = vmatpush.xpose.msra.mxu0 0.0
    %1225 = vmatpush.xpose.msra.mxu0 0.0
    %1226 = vmatpush.xpose.msra.mxu0 0.0
    %1227 = vmatpush.xpose.msra.mxu0 0.0
    %1228 = vmatpush.xpose.msra.mxu0 0.0
    %1229 = vmatpush.xpose.msra.mxu0 0.0
    %1230 = vmatpush.xpose.msra.mxu0 0.0
    %1231 = vmatpush.xpose.msra.mxu0 0.0
    %1232 = vmatpush.xpose.msra.mxu0 0.0
    %1233 = vmatpush.xpose.msra.mxu0 0.0
    %1234 = vmatpush.xpose.msra.mxu0 0.0
    %1235 = vmatpush.xpose.msra.mxu0 0.0
    %1236 = vmatpush.xpose.msra.mxu0 %v941
    %1237 = vmatpush.xpose.msra.mxu0 %v917
    %1238 = vmatmul.f32.gmra.mxu0 %v982
    %v1239 = vpop.f32.mrf.mxu0
    %v1240 = vadd.f32 %v1220, %v1239
    %1241 = vdwg.mxu0
    %1242 = vmatpush.xpose.msra.mxu0 0.0
    %1243 = vmatpush.xpose.msra.mxu0 0.0
    %1244 = vmatpush.xpose.msra.mxu0 0.0
    %1245 = vmatpush.xpose.msra.mxu0 0.0
    %1246 = vmatpush.xpose.msra.mxu0 0.0
    %1247 = vmatpush.xpose.msra.mxu0 0.0
    %1248 = vmatpush.xpose.msra.mxu0 0.0
    %1249 = vmatpush.xpose.msra.mxu0 0.0
    %1250 = vmatpush.xpose.msra.mxu0 0.0
    %1251 = vmatpush.xpose.msra.mxu0 0.0
    %1252 = vmatpush.xpose.msra.mxu0 0.0
    %1253 = vmatpush.xpose.msra.mxu0 0.0
    %1254 = vmatpush.xpose.msra.mxu0 0.0
    %1255 = vmatpush.xpose.msra.mxu0 0.0
    %1256 = vmatpush.xpose.msra.mxu0 %v942
    %1257 = vmatpush.xpose.msra.mxu0 %v918
    %1258 = vmatmul.f32.gmra.mxu0 %v983
    %v1259 = vpop.f32.mrf.mxu0
    %v1260 = vadd.f32 %v1240, %v1259
    %1261 = vdwg.mxu0
    %1262 = vmatpush.xpose.msra.mxu0 0.0
    %1263 = vmatpush.xpose.msra.mxu0 0.0
    %1264 = vmatpush.xpose.msra.mxu0 0.0
    %1265 = vmatpush.xpose.msra.mxu0 0.0
    %1266 = vmatpush.xpose.msra.mxu0 0.0
    %1267 = vmatpush.xpose.msra.mxu0 0.0
    %1268 = vmatpush.xpose.msra.mxu0 0.0
    %1269 = vmatpush.xpose.msra.mxu0 0.0
    %1270 = vmatpush.xpose.msra.mxu0 0.0
    %1271 = vmatpush.xpose.msra.mxu0 0.0
    %1272 = vmatpush.xpose.msra.mxu0 0.0
    %1273 = vmatpush.xpose.msra.mxu0 0.0
    %1274 = vmatpush.xpose.msra.mxu0 0.0
    %1275 = vmatpush.xpose.msra.mxu0 0.0
    %1276 = vmatpush.xpose.msra.mxu0 %v943
    %1277 = vmatpush.xpose.msra.mxu0 %v919
    %1278 = vmatmul.f32.gmra.mxu0 %v984
    %v1279 = vpop.f32.mrf.mxu0
    %v1280 = vadd.f32 %v1260, %v1279
    %1281 = vdwg.mxu0
    %1282 = vmatpush.xpose.msra.mxu0 0.0
    %1283 = vmatpush.xpose.msra.mxu0 0.0
    %1284 = vmatpush.xpose.msra.mxu0 0.0
    %1285 = vmatpush.xpose.msra.mxu0 0.0
    %1286 = vmatpush.xpose.msra.mxu0 0.0
    %1287 = vmatpush.xpose.msra.mxu0 0.0
    %1288 = vmatpush.xpose.msra.mxu0 0.0
    %1289 = vmatpush.xpose.msra.mxu0 0.0
    %1290 = vmatpush.xpose.msra.mxu0 0.0
    %1291 = vmatpush.xpose.msra.mxu0 0.0
    %1292 = vmatpush.xpose.msra.mxu0 0.0
    %1293 = vmatpush.xpose.msra.mxu0 0.0
    %1294 = vmatpush.xpose.msra.mxu0 0.0
    %1295 = vmatpush.xpose.msra.mxu0 0.0
    %1296 = vmatpush.xpose.msra.mxu0 %v944
    %1297 = vmatpush.xpose.msra.mxu0 %v920
    %1298 = vmatmul.f32.gmra.mxu0 %v985
    %v1299 = vpop.f32.mrf.mxu0
    %v1300 = vadd.f32 %v1280, %v1299
    %1301 = vdwg.mxu0
    %1302 = vmatpush.xpose.msra.mxu0 0.0
    %1303 = vmatpush.xpose.msra.mxu0 0.0
    %1304 = vmatpush.xpose.msra.mxu0 0.0
    %1305 = vmatpush.xpose.msra.mxu0 0.0
    %1306 = vmatpush.xpose.msra.mxu0 0.0
    %1307 = vmatpush.xpose.msra.mxu0 0.0
    %1308 = vmatpush.xpose.msra.mxu0 0.0
    %1309 = vmatpush.xpose.msra.mxu0 0.0
    %1310 = vmatpush.xpose.msra.mxu0 0.0
    %1311 = vmatpush.xpose.msra.mxu0 0.0
    %1312 = vmatpush.xpose.msra.mxu0 0.0
    %1313 = vmatpush.xpose.msra.mxu0 0.0
    %1314 = vmatpush.xpose.msra.mxu0 0.0
    %1315 = vmatpush.xpose.msra.mxu0 0.0
    %1316 = vmatpush.xpose.msra.mxu0 %v945
    %1317 = vmatpush.xpose.msra.mxu0 %v921
    %1318 = vmatmul.f32.gmra.mxu0 %v986
    %v1319 = vpop.f32.mrf.mxu0
    %v1320 = vadd.f32 %v1300, %v1319
    %1321 = vdwg.mxu0
    %1322 = vmatpush.xpose.msra.mxu0 0.0
    %1323 = vmatpush.xpose.msra.mxu0 0.0
    %1324 = vmatpush.xpose.msra.mxu0 0.0
    %1325 = vmatpush.xpose.msra.mxu0 0.0
    %1326 = vmatpush.xpose.msra.mxu0 0.0
    %1327 = vmatpush.xpose.msra.mxu0 0.0
    %1328 = vmatpush.xpose.msra.mxu0 0.0
    %1329 = vmatpush.xpose.msra.mxu0 0.0
    %1330 = vmatpush.xpose.msra.mxu0 0.0
    %1331 = vmatpush.xpose.msra.mxu0 0.0
    %1332 = vmatpush.xpose.msra.mxu0 0.0
    %1333 = vmatpush.xpose.msra.mxu0 0.0
    %1334 = vmatpush.xpose.msra.mxu0 0.0
    %1335 = vmatpush.xpose.msra.mxu0 0.0
    %1336 = vmatpush.xpose.msra.mxu0 %v946
    %1337 = vmatpush.xpose.msra.mxu0 %v922
    %1338 = vmatmul.f32.gmra.mxu0 %v987
    %v1339 = vpop.f32.mrf.mxu0
    %v1340 = vadd.f32 %v1320, %v1339
    %1341 = vdwg.mxu0
    %1342 = vmatpush.xpose.msra.mxu0 0.0
    %1343 = vmatpush.xpose.msra.mxu0 0.0
    %1344 = vmatpush.xpose.msra.mxu0 0.0
    %1345 = vmatpush.xpose.msra.mxu0 0.0
    %1346 = vmatpush.xpose.msra.mxu0 0.0
    %1347 = vmatpush.xpose.msra.mxu0 0.0
    %1348 = vmatpush.xpose.msra.mxu0 0.0
    %1349 = vmatpush.xpose.msra.mxu0 0.0
    %1350 = vmatpush.xpose.msra.mxu0 0.0
    %1351 = vmatpush.xpose.msra.mxu0 0.0
    %1352 = vmatpush.xpose.msra.mxu0 0.0
    %1353 = vmatpush.xpose.msra.mxu0 0.0
    %1354 = vmatpush.xpose.msra.mxu0 0.0
    %1355 = vmatpush.xpose.msra.mxu0 0.0
    %1356 = vmatpush.xpose.msra.mxu0 %v947
    %1357 = vmatpush.xpose.msra.mxu0 %v923
    %1358 = vmatmul.f32.gmra.mxu0 %v990
    %v1359 = vpop.f32.mrf.mxu0
    %v1360 = vadd.f32 %v1340, %v1359
    %1361 = vdwg.mxu0
    %1362 = vmatpush.xpose.msra.mxu0 0.0
    %1363 = vmatpush.xpose.msra.mxu0 0.0
    %1364 = vmatpush.xpose.msra.mxu0 0.0
    %1365 = vmatpush.xpose.msra.mxu0 0.0
    %1366 = vmatpush.xpose.msra.mxu0 0.0
    %1367 = vmatpush.xpose.msra.mxu0 0.0
    %1368 = vmatpush.xpose.msra.mxu0 0.0
    %1369 = vmatpush.xpose.msra.mxu0 0.0
    %1370 = vmatpush.xpose.msra.mxu0 0.0
    %1371 = vmatpush.xpose.msra.mxu0 0.0
    %1372 = vmatpush.xpose.msra.mxu0 0.0
    %1373 = vmatpush.xpose.msra.mxu0 0.0
    %1374 = vmatpush.xpose.msra.mxu0 0.0
    %1375 = vmatpush.xpose.msra.mxu0 0.0
    %1376 = vmatpush.xpose.msra.mxu0 %v948
    %1377 = vmatpush.xpose.msra.mxu0 %v924
    %1378 = vmatmul.f32.gmra.mxu0 %v991
    %v1379 = vpop.f32.mrf.mxu0
    %v1380 = vadd.f32 %v1360, %v1379
    %1381 = vdwg.mxu0
    %1382 = vmatpush.xpose.msra.mxu0 0.0
    %1383 = vmatpush.xpose.msra.mxu0 0.0
    %1384 = vmatpush.xpose.msra.mxu0 0.0
    %1385 = vmatpush.xpose.msra.mxu0 0.0
    %1386 = vmatpush.xpose.msra.mxu0 0.0
    %1387 = vmatpush.xpose.msra.mxu0 0.0
    %1388 = vmatpush.xpose.msra.mxu0 0.0
    %1389 = vmatpush.xpose.msra.mxu0 0.0
    %1390 = vmatpush.xpose.msra.mxu0 0.0
    %1391 = vmatpush.xpose.msra.mxu0 0.0
    %1392 = vmatpush.xpose.msra.mxu0 0.0
    %1393 = vmatpush.xpose.msra.mxu0 0.0
    %1394 = vmatpush.xpose.msra.mxu0 0.0
    %1395 = vmatpush.xpose.msra.mxu0 0.0
    %1396 = vmatpush.xpose.msra.mxu0 %v949
    %1397 = vmatpush.xpose.msra.mxu0 %v925
    %1398 = vmatmul.f32.gmra.mxu0 %v992
    %v1399 = vpop.f32.mrf.mxu0
    %v1400 = vadd.f32 %v1380, %v1399
    %1401 = vdwg.mxu0
    %1402 = vmatpush.xpose.msra.mxu0 0.0
    %1403 = vmatpush.xpose.msra.mxu0 0.0
    %1404 = vmatpush.xpose.msra.mxu0 0.0
    %1405 = vmatpush.xpose.msra.mxu0 0.0
    %1406 = vmatpush.xpose.msra.mxu0 0.0
    %1407 = vmatpush.xpose.msra.mxu0 0.0
    %1408 = vmatpush.xpose.msra.mxu0 0.0
    %1409 = vmatpush.xpose.msra.mxu0 0.0
    %1410 = vmatpush.xpose.msra.mxu0 0.0
    %1411 = vmatpush.xpose.msra.mxu0 0.0
    %1412 = vmatpush.xpose.msra.mxu0 0.0
    %1413 = vmatpush.xpose.msra.mxu0 0.0
    %1414 = vmatpush.xpose.msra.mxu0 0.0
    %1415 = vmatpush.xpose.msra.mxu0 0.0
    %1416 = vmatpush.xpose.msra.mxu0 %v950
    %1417 = vmatpush.xpose.msra.mxu0 %v926
    %1418 = vmatmul.f32.gmra.mxu0 %v993
    %v1419 = vpop.f32.mrf.mxu0
    %v1420 = vadd.f32 %v1400, %v1419
    %1421 = vdwg.mxu0
    %1422 = vmatpush.xpose.msra.mxu0 0.0
    %1423 = vmatpush.xpose.msra.mxu0 0.0
    %1424 = vmatpush.xpose.msra.mxu0 0.0
    %1425 = vmatpush.xpose.msra.mxu0 0.0
    %1426 = vmatpush.xpose.msra.mxu0 0.0
    %1427 = vmatpush.xpose.msra.mxu0 0.0
    %1428 = vmatpush.xpose.msra.mxu0 0.0
    %1429 = vmatpush.xpose.msra.mxu0 0.0
    %1430 = vmatpush.xpose.msra.mxu0 0.0
    %1431 = vmatpush.xpose.msra.mxu0 0.0
    %1432 = vmatpush.xpose.msra.mxu0 0.0
    %1433 = vmatpush.xpose.msra.mxu0 0.0
    %1434 = vmatpush.xpose.msra.mxu0 0.0
    %1435 = vmatpush.xpose.msra.mxu0 0.0
    %1436 = vmatpush.xpose.msra.mxu0 %v951
    %1437 = vmatpush.xpose.msra.mxu0 %v927
    %1438 = vmatmul.f32.gmra.mxu0 %v994
    %v1439 = vpop.f32.mrf.mxu0
    %v1440 = vadd.f32 %v1420, %v1439
    %1441 = vdwg.mxu0
    %1442 = vmatpush.xpose.msra.mxu0 0.0
    %1443 = vmatpush.xpose.msra.mxu0 0.0
    %1444 = vmatpush.xpose.msra.mxu0 0.0
    %1445 = vmatpush.xpose.msra.mxu0 0.0
    %1446 = vmatpush.xpose.msra.mxu0 0.0
    %1447 = vmatpush.xpose.msra.mxu0 0.0
    %1448 = vmatpush.xpose.msra.mxu0 0.0
    %1449 = vmatpush.xpose.msra.mxu0 0.0
    %1450 = vmatpush.xpose.msra.mxu0 0.0
    %1451 = vmatpush.xpose.msra.mxu0 0.0
    %1452 = vmatpush.xpose.msra.mxu0 0.0
    %1453 = vmatpush.xpose.msra.mxu0 0.0
    %1454 = vmatpush.xpose.msra.mxu0 0.0
    %1455 = vmatpush.xpose.msra.mxu0 0.0
    %1456 = vmatpush.xpose.msra.mxu0 %v952
    %1457 = vmatpush.xpose.msra.mxu0 %v928
    %1458 = vmatmul.f32.gmra.mxu0 %v995
    %v1459 = vpop.f32.mrf.mxu0
    %v1460 = vadd.f32 %v1440, %v1459
    %1461 = vdwg.mxu0
    %1462 = vmatpush.xpose.msra.mxu0 0.0
    %1463 = vmatpush.xpose.msra.mxu0 0.0
    %1464 = vmatpush.xpose.msra.mxu0 0.0
    %1465 = vmatpush.xpose.msra.mxu0 0.0
    %1466 = vmatpush.xpose.msra.mxu0 0.0
    %1467 = vmatpush.xpose.msra.mxu0 0.0
    %1468 = vmatpush.xpose.msra.mxu0 0.0
    %1469 = vmatpush.xpose.msra.mxu0 0.0
    %1470 = vmatpush.xpose.msra.mxu0 0.0
    %1471 = vmatpush.xpose.msra.mxu0 0.0
    %1472 = vmatpush.xpose.msra.mxu0 0.0
    %1473 = vmatpush.xpose.msra.mxu0 0.0
    %1474 = vmatpush.xpose.msra.mxu0 0.0
    %1475 = vmatpush.xpose.msra.mxu0 0.0
    %1476 = vmatpush.xpose.msra.mxu0 %v953
    %1477 = vmatpush.xpose.msra.mxu0 %v929
    %1478 = vmatmul.f32.gmra.mxu0 %v996
    %v1479 = vpop.f32.mrf.mxu0
    %v1480 = vadd.f32 %v1460, %v1479
    %1481 = vdwg.mxu0
    %1482 = vmatpush.xpose.msra.mxu0 0.0
    %1483 = vmatpush.xpose.msra.mxu0 0.0
    %1484 = vmatpush.xpose.msra.mxu0 0.0
    %1485 = vmatpush.xpose.msra.mxu0 0.0
    %1486 = vmatpush.xpose.msra.mxu0 0.0
    %1487 = vmatpush.xpose.msra.mxu0 0.0
    %1488 = vmatpush.xpose.msra.mxu0 0.0
    %1489 = vmatpush.xpose.msra.mxu0 0.0
    %1490 = vmatpush.xpose.msra.mxu0 0.0
    %1491 = vmatpush.xpose.msra.mxu0 0.0
    %1492 = vmatpush.xpose.msra.mxu0 0.0
    %1493 = vmatpush.xpose.msra.mxu0 0.0
    %1494 = vmatpush.xpose.msra.mxu0 0.0
    %1495 = vmatpush.xpose.msra.mxu0 0.0
    %1496 = vmatpush.xpose.msra.mxu0 %v954
    %1497 = vmatpush.xpose.msra.mxu0 %v930
    %1498 = vmatmul.f32.gmra.mxu0 %v997
    %v1499 = vpop.f32.mrf.mxu0
    %v1500 = vadd.f32 %v1480, %v1499
    %1501 = vdwg.mxu0
    %vm1502 = vcmask 523264
    %v1504 = vsel %vm1502, %v877, 0
    %v1507 = vsel %vm1502, %v881, 0
    %v1510 = vsel %vm1502, %v882, 0
    %1512 = vmatpush.xpose.msra.mxu0 0.0
    %1513 = vmatpush.xpose.msra.mxu0 0.0
    %1514 = vmatpush.xpose.msra.mxu0 0.0
    %1515 = vmatpush.xpose.msra.mxu0 0.0
    %1516 = vmatpush.xpose.msra.mxu0 0.0
    %1517 = vmatpush.xpose.msra.mxu0 0.0
    %1518 = vmatpush.xpose.msra.mxu0 0.0
    %1519 = vmatpush.xpose.msra.mxu0 0.0
    %1520 = vmatpush.xpose.msra.mxu0 0.0
    %1521 = vmatpush.xpose.msra.mxu0 0.0
    %1522 = vmatpush.xpose.msra.mxu0 0.0
    %1523 = vmatpush.xpose.msra.mxu0 0.0
    %1524 = vmatpush.xpose.msra.mxu0 0.0
    %1525 = vmatpush.xpose.msra.mxu0 0.0
    %1526 = vmatpush.xpose.msra.mxu0 %v1510
    %1527 = vmatpush.xpose.msra.mxu0 %v1507
    %1528 = vmatmul.f32.gmra.mxu0 %v1504
    %v1529 = vpop.f32.mrf.mxu0
    %v1530 = vadd.f32 %v1500, %v1529
    %1531 = vdwg.mxu0
    %v1532 = vld [vmem:[%s5] sm:$0x1]
    %v1534 = vperm.slane %v1532, 0
    %v1536 = vadd.f32 %v1530, %v1534
    %vm1537 = vcmask 74752
    %1538 = vst.msk [vmem:[#allocation5] sm:$0x3] %vm1537, %v1536
    // Predicated region
    $region30: #{fused_net_forward.1} parent=1 // pred_check
      _
    $region31: #{fused_net_forward.1} parent=1 // pred_check_branch
      %1540 = sbr.rel (0) target = $region33
    $region32: #{fused_net_forward.1} parent=1 // pred_region
      %1542 = vsyncadd [#allocation4], 0
      %s1544 = sshll.u32 [#allocation5], 4
      %s1545 = int_to_ptr.vmem [resolvable:$true] %s1544
      %s1546 = sshll.u32 %s6, 4
      %s1547 = int_to_ptr.hbm [resolvable:$true] %s1546
      %1549 = dma.vmem_to_hbm [thread:$0]  %s1545, 32, %s1547, [#allocation4]
    $region33: #{fused_net_forward.1} parent=1 // pred_fallthru
      _
    // Predicated region
    $region34: #{fused_net_forward.1} parent=1 // pred_check
      _
    $region35: #{fused_net_forward.1} parent=1 // pred_check_branch
      %1551 = sbr.rel (0) target = $region37
    $region36: #{fused_net_forward.1} parent=1 // pred_region
      %1553 = dma.done [#allocation4], 32
    $region37: #{fused_net_forward.1} parent=1 // pred_fallthru
      _
    %1554 = vsyncpa [#allocation3], 1
    %1555 = vsyncpa [#allocation4], 1

</llo_original>
